<compile_context>
chip_gen: v7x
topology: tpu7x:2x2x1
jax: 0.10.0
libtpu: 0.0.40
codegen_flags: <defaults>
</compile_context>

<pallas_src>
import functools

import jax
import jax.numpy as jnp
from jax.experimental import pallas as pl
from jax.experimental.pallas import tpu as pltpu

MXU_DTYPE = jnp.bfloat16
_VMEM_LIMIT = 32 * 1024 * 1024   # explicit scoped-VMEM ceiling (safe on v5e/v6e/v7x)


# --------------------------------------------------------------------------
# Kernel 1: normalize + streamed thresholded-adjacency aggregation + gated
#           edge conv + per-tile BatchNorm partial sums.
#   grid = (B, QT, KT); KT innermost "arbitrary" (accumulator), B/QT "parallel".
# --------------------------------------------------------------------------
def _gcn_kernel(xq_ref, xk_ref, wmsg_ref, bmsg_ref, wgr_ref, bgr_ref,
                gcn_ref, xn_ref, part_ref,
                acc_ref, xnq_ref, xnqb_ref, *, thr1):
    k = pl.program_id(2)
    k_last = pl.num_programs(2) - 1

    @pl.when(k == 0)
    def _init():
        xq = xq_ref[0]                                             # (TQ, C) f32
        inv = jax.lax.rsqrt(jnp.maximum(
            jnp.sum(xq * xq, axis=-1, keepdims=True), 1e-24))      # F.normalize
        xnq = xq * inv
        xnq_ref[...] = xnq
        xnqb_ref[...] = xnq.astype(MXU_DTYPE)                      # bf16 MXU copy
        acc_ref[...] = jnp.zeros_like(acc_ref)

    # Normalize the key tile (VPU + EUP work, hidden under the MXU matmuls).
    xk = xk_ref[0]                                                 # (TK, C)
    invk = jax.lax.rsqrt(jnp.maximum(
        jnp.sum(xk * xk, axis=-1, keepdims=True), 1e-24))
    xnk_b = (xk * invk).astype(MXU_DTYPE)

    xnq_b = xnqb_ref[...]

    # adjacency tile: cosine similarity (TQ, TK) -- never materialize (N, N).
    adj = jax.lax.dot_general(
        xnq_b, xnk_b, dimension_numbers=(((1,), (1,)), ((), ())),
        preferred_element_type=jnp.float32)
    a = jnp.where(adj > thr1, adj, 0.0)                            # keep sim > thr1

    # message aggregation accumulator: agg += a_tile @ xn_key_tile
    acc_ref[...] += jax.lax.dot_general(
        a.astype(MXU_DTYPE), xnk_b,
        dimension_numbers=(((1,), (0,)), ((), ())),
        preferred_element_type=jnp.float32)

    @pl.when(k == k_last)
    def _finalize():
        xnq = xnq_ref[...]                                         # (TQ, C) f32
        c = xnq.shape[-1]
        # message path: (agg @ Wm + bm)
        msg = jax.lax.dot_general(
            acc_ref[...].astype(MXU_DTYPE), wmsg_ref[...],
            dimension_numbers=(((1,), (0,)), ((), ())),
            preferred_element_type=jnp.float32) + bmsg_ref[...]
        # fused gate+root path: xn @ [Wg | Wr] + [bg | br]
        gr = jax.lax.dot_general(
            xnqb_ref[...], wgr_ref[...],
            dimension_numbers=(((1,), (0,)), ((), ())),
            preferred_element_type=jnp.float32) + bgr_ref[...]
        gate = jax.nn.sigmoid(gr[:, :c])
        root = gr[:, c:]
        gcn = gate * msg + root                                    # (TQ, C)

        gcn_ref[0] = gcn
        xn_ref[0] = xnq
        # per-tile BatchNorm partial statistics (sum, sum of squares)
        s = jnp.sum(gcn, axis=0, keepdims=True)                    # (1, C)
        ss = jnp.sum(gcn * gcn, axis=0, keepdims=True)             # (1, C)
        part_ref[...] = jnp.concatenate([s, ss], axis=0)[None, None]


# --------------------------------------------------------------------------
# Kernel 2: BatchNorm (global batch stats from partials) + residual + ReLU,
#           global_max_pool over nodes, mlpCA1 + sigmoid -> channel attention.
#   grid = (B, QT); QT "arbitrary" (running-max accumulator), B "parallel".
# --------------------------------------------------------------------------
def _bn_pool_ca_kernel(gcn_ref, xn_ref, part_ref, gamma_ref, beta_ref,
                       wa_ref, ba_ref, wb_ref, bb_ref,
                       y1_ref, w1_ref,
                       ss_ref, max_ref, *, bn_eps, n_total):
    q = pl.program_id(1)
    q_last = pl.num_programs(1) - 1

    @pl.when(q == 0)
    def _init():
        p = part_ref[...]                                          # (B, QT, 2, C)
        sums = jnp.sum(p, axis=(0, 1))                             # (2, C)
        mean = sums[0:1, :] * (1.0 / n_total)
        ex2 = sums[1:2, :] * (1.0 / n_total)
        var = jnp.maximum(ex2 - mean * mean, 0.0)
        rstd = jax.lax.rsqrt(var + bn_eps)
        scale = gamma_ref[...] * rstd
        shift = beta_ref[...] - mean * scale
        ss_ref[...] = jnp.concatenate([scale, shift], axis=0)      # (2, C)
        max_ref[...] = jnp.full_like(max_ref, -jnp.inf)

    scale = ss_ref[0:1, :]
    shift = ss_ref[1:2, :]
    # y1 = relu(bn(gcn) + xn)   (training-mode batch statistics)
    y1 = jnp.maximum(gcn_ref[0] * scale + shift + xn_ref[0], 0.0)  # (TQ, C)
    y1_ref[0] = y1
    max_ref[...] = jnp.maximum(max_ref[...],
                               jnp.max(y1, axis=0, keepdims=True))

    @pl.when(q == q_last)
    def _channel_attention():
        pooled = max_ref[...]                                      # (1, C)
        h = jnp.maximum(
            jax.lax.dot_general(pooled.astype(MXU_DTYPE), wa_ref[...],
                                dimension_numbers=(((1,), (0,)), ((), ())),
                                preferred_element_type=jnp.float32)
            + ba_ref[...], 0.0)
        w1 = jax.nn.sigmoid(
            jax.lax.dot_general(h.astype(MXU_DTYPE), wb_ref[...],
                                dimension_numbers=(((1,), (0,)), ((), ())),
                                preferred_element_type=jnp.float32)
            + bb_ref[...])
        w1_ref[0] = w1                                             # (1, C)


# --------------------------------------------------------------------------
# Kernel 3: channel attention broadcast + lineFu.
#   grid = (B, QT), fully parallel.
# --------------------------------------------------------------------------
def _fuse_kernel(y1_ref, w1_ref, wfu_ref, bfu_ref, out_ref):
    gated = w1_ref[0] * y1_ref[0]                                  # (TQ, C)
    y = jax.lax.dot_general(
        gated.astype(MXU_DTYPE), wfu_ref[...],
        dimension_numbers=(((1,), (0,)), ((), ())),
        preferred_element_type=jnp.float32) + bfu_ref[...]
    out_ref[0] = y


# --------------------------------------------------------------------------
# Wrapper
# --------------------------------------------------------------------------
def _full_spec(shape):
    zeros = (0,) * len(shape)
    return pl.BlockSpec(shape, lambda *_: zeros)


def _pick_tile(n, cap=256):
    if n <= cap:
        return n
    t = cap
    while t >= 8:
        if n % t == 0:
            return t
        t -= 8
    return n


def init_params(key, dim):
    """Deterministic synthetic params.  Linear weights are stored as (in, out),
    i.e. already transposed relative to torch.nn.Linear.weight, so kernels
    apply x @ W + b."""
    ks = jax.random.split(key, 6)
    scale = 1.0 / (dim ** 0.5)

    def lin(k):
        kw, kb = jax.random.split(k)
        w = jax.random.uniform(kw, (dim, dim), jnp.float32, -scale, scale)
        b = jax.random.uniform(kb, (1, dim), jnp.float32, -scale, scale)
        return w, b

    w_msg, b_msg = lin(ks[0])
    w_gate, b_gate = lin(ks[1])
    w_root, b_root = lin(ks[2])
    w_a, b_a = lin(ks[3])
    w_b, b_b = lin(ks[4])
    w_fu, b_fu = lin(ks[5])
    return dict(
        w_msg=w_msg, b_msg=b_msg,
        w_gate=w_gate, b_gate=b_gate,
        w_root=w_root, b_root=b_root,
        gamma=jnp.ones((1, dim), jnp.float32),
        beta=jnp.zeros((1, dim), jnp.float32),
        w_a=w_a, b_a=b_a,
        w_b=w_b, b_b=b_b,
        w_fu=w_fu, b_fu=b_fu,
    )


def graph_inference(x_bcn, params, *, thr1, tile_q=None, tile_k=None,
                    bn_eps=1e-5):
    """x_bcn: (B, C, node_num) as in the PyTorch module; returns (B, C, node_num)."""
    B, C, N = x_bcn.shape
    x = jnp.transpose(x_bcn, (0, 2, 1)).astype(jnp.float32)        # (B, N, C) glue

    tq = tile_q or _pick_tile(N)
    tk = tile_k or _pick_tile(N)
    assert N % tq == 0 and N % tk == 0, (N, tq, tk)
    assert (tq % 8 == 0) or tq == N
    assert (tk % 8 == 0) or tk == N
    nq, nk = N // tq, N // tk
    f32 = jnp.float32

    # bf16 copies of MXU weights; fuse gate+root into a single (C, 2C) matmul.
    w_msg = params['w_msg'].astype(MXU_DTYPE)
    b_msg = params['b_msg'].astype(f32)
    w_gr = jnp.concatenate([params['w_gate'], params['w_root']],
                           axis=1).astype(MXU_DTYPE)               # (C, 2C)
    b_gr = jnp.concatenate([params['b_gate'], params['b_root']],
                           axis=1).astype(f32)                     # (1, 2C)
    w_a = params['w_a'].astype(MXU_DTYPE)
    w_b = params['w_b'].astype(MXU_DTYPE)
    w_fu = params['w_fu'].astype(MXU_DTYPE)
    gamma = params['gamma'].astype(f32)
    beta = params['beta'].astype(f32)
    b_a, b_b, b_fu = (params['b_a'].astype(f32), params['b_b'].astype(f32),
                      params['b_fu'].astype(f32))

    # ---- pass 1: streamed adjacency + gated edge conv + BN partials ----
    gcn, xn, partials = pl.pallas_call(
        functools.partial(_gcn_kernel, thr1=float(thr1)),
        grid=(B, nq, nk),
        in_specs=[
            pl.BlockSpec((1, tq, C), lambda b, q, k: (b, q, 0)),   # query nodes
            pl.BlockSpec((1, tk, C), lambda b, q, k: (b, k, 0)),   # key nodes
            _full_spec((C, C)),        # W_msg
            _full_spec((1, C)),        # b_msg
            _full_spec((C, 2 * C)),    # W_gate|W_root
            _full_spec((1, 2 * C)),    # b_gate|b_root
        ],
        out_specs=[
            pl.BlockSpec((1, tq, C), lambda b, q, k: (b, q, 0)),   # gcn
            pl.BlockSpec((1, tq, C), lambda b, q, k: (b, q, 0)),   # xn
            pl.BlockSpec((1, 1, 2, C), lambda b, q, k: (b, q, 0, 0)),  # BN partials
        ],
        out_shape=[
            jax.ShapeDtypeStruct((B, N, C), f32),
            jax.ShapeDtypeStruct((B, N, C), f32),
            jax.ShapeDtypeStruct((B, nq, 2, C), f32),
        ],
        scratch_shapes=[
            pltpu.VMEM((tq, C), f32),        # neighbor-aggregation accumulator
            pltpu.VMEM((tq, C), f32),        # normalized query tile (f32)
            pltpu.VMEM((tq, C), MXU_DTYPE),  # normalized query tile (bf16, MXU)
        ],
        compiler_params=pltpu.CompilerParams(
            dimension_semantics=("parallel", "parallel", "arbitrary"),
            vmem_limit_bytes=_VMEM_LIMIT),
    )(x, x, w_msg, b_msg, w_gr, b_gr)

    # ---- pass 2: BN (global stats) + residual/ReLU + max-pool + mlpCA1 ----
    y1, w1 = pl.pallas_call(
        functools.partial(_bn_pool_ca_kernel, bn_eps=float(bn_eps),
                          n_total=float(B * N)),
        grid=(B, nq),
        in_specs=[
            pl.BlockSpec((1, tq, C), lambda b, q: (b, q, 0)),      # gcn
            pl.BlockSpec((1, tq, C), lambda b, q: (b, q, 0)),      # xn
            _full_spec((B, nq, 2, C)),                             # BN partials
            _full_spec((1, C)), _full_spec((1, C)),                # gamma, beta
            _full_spec((C, C)), _full_spec((1, C)),                # W_a, b_a
            _full_spec((C, C)), _full_spec((1, C)),                # W_b, b_b
        ],
        out_specs=[
            pl.BlockSpec((1, tq, C), lambda b, q: (b, q, 0)),      # y1
            pl.BlockSpec((1, 1, C), lambda b, q: (b, 0, 0)),       # w1
        ],
        out_shape=[
            jax.ShapeDtypeStruct((B, N, C), f32),
            jax.ShapeDtypeStruct((B, 1, C), f32),
        ],
        scratch_shapes=[
            pltpu.VMEM((2, C), f32),     # fused BN scale / shift
            pltpu.VMEM((1, C), f32),     # running per-batch channel max
        ],
        compiler_params=pltpu.CompilerParams(
            dimension_semantics=("parallel", "arbitrary"),
            vmem_limit_bytes=_VMEM_LIMIT),
    )(gcn, xn, partials, gamma, beta, w_a, b_a, w_b, b_b)

    # ---- pass 3: channel-attention gating + lineFu ----
    out_bnc = pl.pallas_call(
        _fuse_kernel,
        grid=(B, nq),
        in_specs=[
            pl.BlockSpec((1, tq, C), lambda b, q: (b, q, 0)),      # y1
            pl.BlockSpec((1, 1, C), lambda b, q: (b, 0, 0)),       # w1
            _full_spec((C, C)),                                    # W_fu
            _full_spec((1, C)),                                    # b_fu
        ],
        out_specs=pl.BlockSpec((1, tq, C), lambda b, q: (b, q, 0)),
        out_shape=jax.ShapeDtypeStruct((B, N, C), f32),
        compiler_params=pltpu.CompilerParams(
            dimension_semantics=("parallel", "parallel"),
            vmem_limit_bytes=_VMEM_LIMIT),
    )(y1, w1, w_fu, b_fu)

    return jnp.transpose(out_bnc, (0, 2, 1))                       # (B, C, N) glue


if __name__ == "__main__":
    # Small shapes consistent with the module: node_num = bknum^2 * bndnum.
    # C=128 keeps elementwise/store paths lane-dense (128-lane vregs).
    B, C = 2, 128
    bknum, bndnum = 2, 16
    node_num = bknum * bknum * bndnum      # 64
    thr1 = 0.5                             # `loop` is unused in forward()

    key = jax.random.PRNGKey(0)
    kx, kp = jax.random.split(key)
    x = jax.random.normal(kx, (B, C, node_num), jnp.float32)
    params = init_params(kp, C)

    # tile_q/tile_k = 32 exercises the multi-tile streamed-adjacency path
    # (grid (B, 2, 2)) even at this toy node count.
    out = graph_inference(x, params, thr1=thr1, tile_q=32, tile_k=32)
    out = jax.block_until_ready(out)
    assert out.shape == (B, C, node_num), out.shape
    assert bool(jnp.all(jnp.isfinite(out)))
    print("KERNEL_OK")
</pallas_src>

<mosaic_0001>
module attributes {stable_mosaic.version = 11 : i64} {
  func.func @_gcn_kernel(%arg0: i32, %arg1: i32, %arg2: i32, %arg3: memref<1x32x128xf32, #tpu.memory_space<vmem>>, %arg4: memref<1x32x128xf32, #tpu.memory_space<vmem>>, %arg5: memref<128x128xbf16, #tpu.memory_space<vmem>>, %arg6: memref<1x128xf32, #tpu.memory_space<vmem>>, %arg7: memref<128x256xbf16, #tpu.memory_space<vmem>>, %arg8: memref<1x256xf32, #tpu.memory_space<vmem>>, %arg9: memref<1x32x128xf32, #tpu.memory_space<vmem>>, %arg10: memref<1x32x128xf32, #tpu.memory_space<vmem>>, %arg11: memref<1x1x2x128xf32, #tpu.memory_space<vmem>>, %arg12: memref<32x128xf32, #tpu.memory_space<vmem>>, %arg13: memref<32x128xf32, #tpu.memory_space<vmem>>, %arg14: memref<32x128xbf16, #tpu.memory_space<vmem>>) attributes {dimension_semantics = [#tpu.dimension_semantics<parallel>, #tpu.dimension_semantics<parallel>, #tpu.dimension_semantics<arbitrary>], iteration_bounds = array<i64: 2, 2, 2>, scalar_prefetch = 0 : i64, scratch_operands = 3 : i64, tpu.core_type = #tpu.core_type<tc>, window_params = [{transform_indices = @transform_0, window_bounds = array<i64: 1, 32, 128>}, {transform_indices = @transform_1, window_bounds = array<i64: 1, 32, 128>}, {pipeline_mode = #tpu.pipeline_mode<synchronous>, transform_indices = @transform_2, window_bounds = array<i64: 128, 128>}, {pipeline_mode = #tpu.pipeline_mode<synchronous>, transform_indices = @transform_3, window_bounds = array<i64: 1, 128>}, {pipeline_mode = #tpu.pipeline_mode<synchronous>, transform_indices = @transform_4, window_bounds = array<i64: 128, 256>}, {pipeline_mode = #tpu.pipeline_mode<synchronous>, transform_indices = @transform_5, window_bounds = array<i64: 1, 256>}, {transform_indices = @transform_6, window_bounds = array<i64: 1, 32, 128>}, {transform_indices = @transform_7, window_bounds = array<i64: 1, 32, 128>}, {transform_indices = @transform_8, window_bounds = array<i64: 1, 1, 2, 128>}]} {
    %c0_i32 = arith.constant 0 : i32
    %0 = arith.cmpi eq, %arg2, %c0_i32 : i32
    %1 = arith.extui %0 : i1 to i32
    %c0_i32_0 = arith.constant 0 : i32
    %2 = arith.cmpi ne, %1, %c0_i32_0 : i32
    scf.if %2 {
      %c0_15 = arith.constant 0 : index
      %c0_16 = arith.constant 0 : index
      %c0_17 = arith.constant 0 : index
      %28 = vector.load %arg3[%c0_15, %c0_16, %c0_17] : memref<1x32x128xf32, #tpu.memory_space<vmem>>, vector<1x32x128xf32>
      %29 = vector.shape_cast %28 : vector<1x32x128xf32> to vector<32x128xf32>
      %30 = arith.mulf %29, %29 : vector<32x128xf32>
      %cst_18 = arith.constant dense<0.000000e+00> : vector<32xf32>
      %31 = vector.multi_reduction <add>, %30, %cst_18 [1] : vector<32x128xf32> to vector<32xf32>
      %32 = vector.shape_cast %31 : vector<32xf32> to vector<32x1xf32>
      %cst_19 = arith.constant 1.000000e-24 : f32
      %33 = vector.broadcast %cst_19 : f32 to vector<32x1xf32>
      %34 = arith.maximumf %32, %33 : vector<32x1xf32>
      %35 = math.rsqrt %34 : vector<32x1xf32>
      %36 = vector.broadcast %35 : vector<32x1xf32> to vector<32x128xf32>
      %37 = arith.mulf %29, %36 : vector<32x128xf32>
      %c0_20 = arith.constant 0 : index
      %c0_21 = arith.constant 0 : index
      %38 = vector.load %arg13[%c0_20, %c0_21] : memref<32x128xf32, #tpu.memory_space<vmem>>, vector<32x128xf32>
      tpu.vector_store %arg13[%c0_20, %c0_21], %37 {strides = array<i32>} : memref<32x128xf32, #tpu.memory_space<vmem>>, vector<32x128xf32>,
      %39 = arith.truncf %37 : vector<32x128xf32> to vector<32x128xbf16>
      %c0_22 = arith.constant 0 : index
      %c0_23 = arith.constant 0 : index
      %40 = vector.load %arg14[%c0_22, %c0_23] : memref<32x128xbf16, #tpu.memory_space<vmem>>, vector<32x128xbf16>
      tpu.vector_store %arg14[%c0_22, %c0_23], %39 {strides = array<i32>} : memref<32x128xbf16, #tpu.memory_space<vmem>>, vector<32x128xbf16>,
      %cst_24 = arith.constant 0.000000e+00 : f32
      %41 = vector.broadcast %cst_24 : f32 to vector<32x128xf32>
      %c0_25 = arith.constant 0 : index
      %c0_26 = arith.constant 0 : index
      %42 = vector.load %arg12[%c0_25, %c0_26] : memref<32x128xf32, #tpu.memory_space<vmem>>, vector<32x128xf32>
      tpu.vector_store %arg12[%c0_25, %c0_26], %41 {strides = array<i32>} : memref<32x128xf32, #tpu.memory_space<vmem>>, vector<32x128xf32>,
    } else {
    }
    %c0 = arith.constant 0 : index
    %c0_1 = arith.constant 0 : index
    %c0_2 = arith.constant 0 : index
    %3 = vector.load %arg4[%c0, %c0_1, %c0_2] : memref<1x32x128xf32, #tpu.memory_space<vmem>>, vector<1x32x128xf32>
    %4 = vector.shape_cast %3 : vector<1x32x128xf32> to vector<32x128xf32>
    %5 = arith.mulf %4, %4 : vector<32x128xf32>
    %cst = arith.constant dense<0.000000e+00> : vector<32xf32>
    %6 = vector.multi_reduction <add>, %5, %cst [1] : vector<32x128xf32> to vector<32xf32>
    %7 = vector.shape_cast %6 : vector<32xf32> to vector<32x1xf32>
    %cst_3 = arith.constant 1.000000e-24 : f32
    %8 = vector.broadcast %cst_3 : f32 to vector<32x1xf32>
    %9 = arith.maximumf %7, %8 : vector<32x1xf32>
    %10 = math.rsqrt %9 : vector<32x1xf32>
    %11 = vector.broadcast %10 : vector<32x1xf32> to vector<32x128xf32>
    %12 = arith.mulf %4, %11 : vector<32x128xf32>
    %13 = arith.truncf %12 : vector<32x128xf32> to vector<32x128xbf16>
    %c0_4 = arith.constant 0 : index
    %c0_5 = arith.constant 0 : index
    %14 = vector.load %arg14[%c0_4, %c0_5] : memref<32x128xbf16, #tpu.memory_space<vmem>>, vector<32x128xbf16>
    %cst_6 = arith.constant dense<0.000000e+00> : vector<32x32xf32>
    %15 = tpu.matmul %14, %13, %cst_6 {dimension_numbers = #tpu.dot_dimension_numbers<[1], [1], [0], [0], [0, 0, 1, 0], [], []>} : vector<32x128xbf16>, vector<32x128xbf16>, vector<32x32xf32> -> vector<32x32xf32>
    %cst_7 = arith.constant 5.000000e-01 : f32
    %16 = vector.broadcast %cst_7 : f32 to vector<32x32xf32>
    %17 = arith.cmpf ogt, %15, %16 : vector<32x32xf32>
    %cst_8 = arith.constant 0.000000e+00 : f32
    %18 = vector.broadcast %cst_8 : f32 to vector<32x32xf32>
    %19 = arith.select %17, %15, %18 : vector<32x32xi1>, vector<32x32xf32>
    %c0_9 = arith.constant 0 : index
    %c0_10 = arith.constant 0 : index
    %20 = vector.load %arg12[%c0_9, %c0_10] : memref<32x128xf32, #tpu.memory_space<vmem>>, vector<32x128xf32>
    %21 = arith.truncf %19 : vector<32x32xf32> to vector<32x32xbf16>
    %cst_11 = arith.constant dense<0.000000e+00> : vector<32x128xf32>
    %22 = tpu.matmul %21, %13, %cst_11 {dimension_numbers = #tpu.dot_dimension_numbers<[1], [0], [0], [1], [0, 0, 1, 1], [], []>} : vector<32x32xbf16>, vector<32x128xbf16>, vector<32x128xf32> -> vector<32x128xf32>
    %23 = arith.addf %20, %22 : vector<32x128xf32>
    %c0_12 = arith.constant 0 : index
    %c0_13 = arith.constant 0 : index
    %24 = vector.load %arg12[%c0_12, %c0_13] : memref<32x128xf32, #tpu.memory_space<vmem>>, vector<32x128xf32>
    tpu.vector_store %arg12[%c0_12, %c0_13], %23 {strides = array<i32>} : memref<32x128xf32, #tpu.memory_space<vmem>>, vector<32x128xf32>,
    %c1_i32 = arith.constant 1 : i32
    %25 = arith.cmpi eq, %arg2, %c1_i32 : i32
    %26 = arith.extui %25 : i1 to i32
    %c0_i32_14 = arith.constant 0 : i32
    %27 = arith.cmpi ne, %26, %c0_i32_14 : i32
    scf.if %27 {
      %c0_15 = arith.constant 0 : index
      %c0_16 = arith.constant 0 : index
      %28 = vector.load %arg13[%c0_15, %c0_16] : memref<32x128xf32, #tpu.memory_space<vmem>>, vector<32x128xf32>
      %c0_17 = arith.constant 0 : index
      %c0_18 = arith.constant 0 : index
      %29 = vector.load %arg12[%c0_17, %c0_18] : memref<32x128xf32, #tpu.memory_space<vmem>>, vector<32x128xf32>
      %30 = arith.truncf %29 : vector<32x128xf32> to vector<32x128xbf16>
      %c0_19 = arith.constant 0 : index
      %c0_20 = arith.constant 0 : index
      %31 = vector.load %arg5[%c0_19, %c0_20] : memref<128x128xbf16, #tpu.memory_space<vmem>>, vector<128x128xbf16>
      %cst_21 = arith.constant dense<0.000000e+00> : vector<32x128xf32>
      %32 = tpu.matmul %30, %31, %cst_21 {dimension_numbers = #tpu.dot_dimension_numbers<[1], [0], [0], [1], [0, 0, 1, 1], [], []>} : vector<32x128xbf16>, vector<128x128xbf16>, vector<32x128xf32> -> vector<32x128xf32>
      %c0_22 = arith.constant 0 : index
      %c0_23 = arith.constant 0 : index
      %33 = vector.load %arg6[%c0_22, %c0_23] : memref<1x128xf32, #tpu.memory_space<vmem>>, vector<1x128xf32>
      %34 = vector.broadcast %33 : vector<1x128xf32> to vector<32x128xf32>
      %35 = arith.addf %32, %34 : vector<32x128xf32>
      %c0_24 = arith.constant 0 : index
      %c0_25 = arith.constant 0 : index
      %36 = vector.load %arg14[%c0_24, %c0_25] : memref<32x128xbf16, #tpu.memory_space<vmem>>, vector<32x128xbf16>
      %c0_26 = arith.constant 0 : index
      %c0_27 = arith.constant 0 : index
      %37 = vector.load %arg7[%c0_26, %c0_27] : memref<128x256xbf16, #tpu.memory_space<vmem>>, vector<128x256xbf16>
      %cst_28 = arith.constant dense<0.000000e+00> : vector<32x256xf32>
      %38 = tpu.matmul %36, %37, %cst_28 {dimension_numbers = #tpu.dot_dimension_numbers<[1], [0], [0], [1], [0, 0, 1, 1], [], []>} : vector<32x128xbf16>, vector<128x256xbf16>, vector<32x256xf32> -> vector<32x256xf32>
      %c0_29 = arith.constant 0 : index
      %c0_30 = arith.constant 0 : index
      %39 = vector.load %arg8[%c0_29, %c0_30] : memref<1x256xf32, #tpu.memory_space<vmem>>, vector<1x256xf32>
      %40 = vector.broadcast %39 : vector<1x256xf32> to vector<32x256xf32>
      %41 = arith.addf %38, %40 : vector<32x256xf32>
      %42 = vector.extract_strided_slice %41 {offsets = [0, 0], sizes = [32, 128], strides = [1, 1]} : vector<32x256xf32> to vector<32x128xf32>
      %43 = arith.negf %42 : vector<32x128xf32>
      %44 = math.exp %43 : vector<32x128xf32>
      %cst_31 = arith.constant 1.000000e+00 : f32
      %45 = vector.broadcast %cst_31 : f32 to vector<32x128xf32>
      %46 = arith.addf %45, %44 : vector<32x128xf32>
      %47 = arith.divf %45, %46 : vector<32x128xf32>
      %48 = vector.extract_strided_slice %41 {offsets = [0, 128], sizes = [32, 128], strides = [1, 1]} : vector<32x256xf32> to vector<32x128xf32>
      %49 = arith.mulf %47, %35 : vector<32x128xf32>
      %50 = arith.addf %49, %48 : vector<32x128xf32>
      %c0_32 = arith.constant 0 : index
      %c0_33 = arith.constant 0 : index
      %c0_34 = arith.constant 0 : index
      %51 = vector.load %arg9[%c0_32, %c0_33, %c0_34] : memref<1x32x128xf32, #tpu.memory_space<vmem>>, vector<1x32x128xf32>
      %52 = vector.shape_cast %51 : vector<1x32x128xf32> to vector<32x128xf32>
      %53 = vector.shape_cast %50 : vector<32x128xf32> to vector<1x32x128xf32>
      tpu.vector_store %arg9[%c0_32, %c0_33, %c0_34], %53 {strides = array<i32>} : memref<1x32x128xf32, #tpu.memory_space<vmem>>, vector<1x32x128xf32>,
      %c0_35 = arith.constant 0 : index
      %c0_36 = arith.constant 0 : index
      %c0_37 = arith.constant 0 : index
      %54 = vector.load %arg10[%c0_35, %c0_36, %c0_37] : memref<1x32x128xf32, #tpu.memory_space<vmem>>, vector<1x32x128xf32>
      %55 = vector.shape_cast %54 : vector<1x32x128xf32> to vector<32x128xf32>
      %56 = vector.shape_cast %28 : vector<32x128xf32> to vector<1x32x128xf32>
      tpu.vector_store %arg10[%c0_35, %c0_36, %c0_37], %56 {strides = array<i32>} : memref<1x32x128xf32, #tpu.memory_space<vmem>>, vector<1x32x128xf32>,
      %cst_38 = arith.constant dense<0.000000e+00> : vector<128xf32>
      %57 = vector.multi_reduction <add>, %50, %cst_38 [0] : vector<32x128xf32> to vector<128xf32>
      %58 = vector.shape_cast %57 : vector<128xf32> to vector<1x128xf32>
      %59 = arith.mulf %50, %50 : vector<32x128xf32>
      %cst_39 = arith.constant dense<0.000000e+00> : vector<128xf32>
      %60 = vector.multi_reduction <add>, %59, %cst_39 [0] : vector<32x128xf32> to vector<128xf32>
      %61 = vector.shape_cast %60 : vector<128xf32> to vector<1x128xf32>
      %62 = tpu.concatenate %58, %61 in 0 : vector<1x128xf32>, vector<1x128xf32> -> vector<2x128xf32>
      %63 = vector.shape_cast %62 : vector<2x128xf32> to vector<1x1x2x128xf32>
      %c0_40 = arith.constant 0 : index
      %c0_41 = arith.constant 0 : index
      %c0_42 = arith.constant 0 : index
      %c0_43 = arith.constant 0 : index
      %64 = vector.load %arg11[%c0_40, %c0_41, %c0_42, %c0_43] : memref<1x1x2x128xf32, #tpu.memory_space<vmem>>, vector<1x1x2x128xf32>
      tpu.vector_store %arg11[%c0_40, %c0_41, %c0_42, %c0_43], %63 {strides = array<i32>} : memref<1x1x2x128xf32, #tpu.memory_space<vmem>>, vector<1x1x2x128xf32>,
    } else {
    }
    return
  }
  func.func @transform_0(%arg0: i32, %arg1: i32, %arg2: i32) -> (i32, i32, i32) {
    %c0_i32 = arith.constant 0 : i32
    %c0_i32_0 = arith.constant 0 : i32
    return %arg0, %arg1, %c0_i32 : i32, i32, i32
  }
  func.func @transform_1(%arg0: i32, %arg1: i32, %arg2: i32) -> (i32, i32, i32) {
    %c0_i32 = arith.constant 0 : i32
    %c0_i32_0 = arith.constant 0 : i32
    return %arg0, %arg2, %c0_i32 : i32, i32, i32
  }
  func.func @transform_2(%arg0: i32, %arg1: i32, %arg2: i32) -> (i32, i32) {
    %c0_i32 = arith.constant 0 : i32
    %c0_i32_0 = arith.constant 0 : i32
    %c0_i32_1 = arith.constant 0 : i32
    return %c0_i32, %c0_i32_0 : i32, i32
  }
  func.func @transform_3(%arg0: i32, %arg1: i32, %arg2: i32) -> (i32, i32) {
    %c0_i32 = arith.constant 0 : i32
    %c0_i32_0 = arith.constant 0 : i32
    %c0_i32_1 = arith.constant 0 : i32
    return %c0_i32, %c0_i32_0 : i32, i32
  }
  func.func @transform_4(%arg0: i32, %arg1: i32, %arg2: i32) -> (i32, i32) {
    %c0_i32 = arith.constant 0 : i32
    %c0_i32_0 = arith.constant 0 : i32
    %c0_i32_1 = arith.constant 0 : i32
    return %c0_i32, %c0_i32_0 : i32, i32
  }
  func.func @transform_5(%arg0: i32, %arg1: i32, %arg2: i32) -> (i32, i32) {
    %c0_i32 = arith.constant 0 : i32
    %c0_i32_0 = arith.constant 0 : i32
    %c0_i32_1 = arith.constant 0 : i32
    return %c0_i32, %c0_i32_0 : i32, i32
  }
  func.func @transform_6(%arg0: i32, %arg1: i32, %arg2: i32) -> (i32, i32, i32) {
    %c0_i32 = arith.constant 0 : i32
    %c0_i32_0 = arith.constant 0 : i32
    return %arg0, %arg1, %c0_i32 : i32, i32, i32
  }
  func.func @transform_7(%arg0: i32, %arg1: i32, %arg2: i32) -> (i32, i32, i32) {
    %c0_i32 = arith.constant 0 : i32
    %c0_i32_0 = arith.constant 0 : i32
    return %arg0, %arg1, %c0_i32 : i32, i32, i32
  }
  func.func @transform_8(%arg0: i32, %arg1: i32, %arg2: i32) -> (i32, i32, i32, i32) {
    %c0_i32 = arith.constant 0 : i32
    %c0_i32_0 = arith.constant 0 : i32
    %c0_i32_1 = arith.constant 0 : i32
    return %arg0, %arg1, %c0_i32, %c0_i32_0 : i32, i32, i32, i32
  }
}

</mosaic_0001>

<llo_original>
// kernel: tpu_custom_call.1
$region0: #{tpu_custom_call.1}
  #allocation0 [shape = 'u32[]', space=smem, size = 0x4, offset = 0x4, fixed_abs, tag = 'smem constant byte address 0x4 - core index']
  #allocation1 [shape = 'u32[144,128]{1,0:T(1,128)}', space=vmem, size = 0x12000, scoped, tag = 'internal scratch']
  #allocation2 [shape = 'f32[32,128]{1,0:T(8,128)}', space=vmem, size = 0x4000, scoped, tag = 'scratch operand']
  #allocation3 [shape = 'f32[32,128]{1,0:T(8,128)}', space=vmem, size = 0x4000, scoped, tag = 'scratch operand']
  #allocation4 [shape = 'bf16[32,128]{1,0:T(16,128)(2,1)}', space=vmem, size = 0x2000, scoped, tag = 'scratch operand']
  %s0 = inlined_call_operand.hbm [shape: f32[2,64,128], index: 0, kind: input, shape index: {}]
  %s1 = inlined_call_operand.hbm [shape: f32[2,64,128], index: 1, kind: input, shape index: {}]
  %s2 = inlined_call_operand.hbm [shape: bf16[128,128], index: 2, kind: input, shape index: {}]
  %s3 = inlined_call_operand.vmem [shape: f32[1,128], index: 3, kind: input, shape index: {}]
  %s4 = inlined_call_operand.hbm [shape: bf16[128,256], index: 4, kind: input, shape index: {}]
  %s5 = inlined_call_operand.vmem [shape: f32[1,256], index: 5, kind: input, shape index: {}]
  %s6 = inlined_call_operand.hbm [shape: f32[2,64,128], index: 6, kind: output, shape index: {0}]
  %s7 = inlined_call_operand.hbm [shape: f32[2,64,128], index: 7, kind: output, shape index: {1}]
  %s8 = inlined_call_operand.hbm [shape: f32[2,2,2,128], index: 8, kind: output, shape index: {2}]
  %9 = xla_tuple %s6, %s7, %s8
  %s10 = sld [smem:[#allocation0]]
  $region97: #{tpu_custom_call.1} parent=0
    _
  %s12 = ssub.s32 1, %s10
  %s13 = scalar_select 0, %s12, %s10
  $region1: #{tpu_custom_call.1} parent=0
    #allocation5 [shape = 'u8[32768]{0}', space=vmem, size = 0x8000, scoped, tag = 'input window, operand 0']
    #allocation6 [shape = 's32[2]{0}', space=sflag, size = 0x8, scoped, tag = 'scoped memory for tpu_custom_call.1']
    #allocation7 [shape = 's32[2]{0}', space=sflag, size = 0x8, scoped, tag = 'scoped memory for tpu_custom_call.1']
    #allocation8 [shape = 'u8[32768]{0}', space=vmem, size = 0x8000, scoped, tag = 'input window, operand 1']
    #allocation9 [shape = 's32[2]{0}', space=sflag, size = 0x8, scoped, tag = 'scoped memory for tpu_custom_call.1']
    #allocation10 [shape = 'u8[32768]{0}', space=vmem, size = 0x8000, scoped, tag = 'input window, operand 2, single buffered']
    #allocation11 [shape = 'u8[65536]{0}', space=vmem, size = 0x10000, scoped, tag = 'input window, operand 4, single buffered']
    #allocation12 [shape = 's32[1]{0}', space=sflag, size = 0x4, scoped, tag = 'scoped memory for tpu_custom_call.1']
    #allocation13 [shape = 'u8[32768]{0}', space=vmem, size = 0x8000, scoped, tag = 'output window, operand 0']
    #allocation14 [shape = 'u8[32768]{0}', space=vmem, size = 0x8000, scoped, tag = 'output window, operand 1']
    #allocation15 [shape = 's32[2]{0}', space=sflag, size = 0x8, scoped, tag = 'scoped memory for tpu_custom_call.1']
    #allocation16 [shape = 'u8[2048]{0}', space=vmem, size = 0x800, scoped, tag = 'output window, operand 2']
    %14 = vsyncpa [#allocation6], 0
    %s15 = scalar_lea.sflag [#allocation6], 1
    %16 = vsyncpa %s15, 0
    %17 = vsyncpa [#allocation9], 0
    %s18 = scalar_lea.sflag [#allocation9], 1
    %19 = vsyncpa %s18, 0
    %20 = vsyncpa [#allocation12], 0
    %21 = vsyncpa [#allocation7], 0
    %s22 = scalar_lea.sflag [#allocation7], 1
    %23 = vsyncpa %s22, 0
    %24 = vsyncpa [#allocation15], 0
    %s25 = scalar_lea.sflag [#allocation15], 1
    %26 = vsyncpa %s25, 0
    loop: start=0, step=1, limit=10
    $region2: #{tpu_custom_call.1} parent=1 // loop_pre_header
      _
    $region3: #{tpu_custom_call.1} parent=1 // loop_header
      %s28 = sphi 0, %s32
      %p29 = scmp.ge.s32.totalorder %s28, 10
      %s35 = sphi 0, %s54
      %s36 = sphi 0, %s50
      %s37 = sphi 0, %s46
      %s38 = sphi 0, %s35
      %s39 = sphi 0, %s36
      %s40 = sphi 0, %s37
      %s41 = sphi 0, %s38
      %s42 = sphi 0, %s39
      %s43 = sphi 0, %s40
      %s59 = sphi 0, %s61
      %s62 = sphi 0, %s59
      %s63 = sphi 0, %s62
      %s79 = sphi 0, %s63
      %s87 = sphi 0, %s89
      %s90 = sphi 0, %s87
      %s91 = sphi 0, %s90
      %s107 = sphi 0, %s91
      %s111 = sphi 0, %s111
      %s113 = sphi 0, %s111
      %s114 = sphi 0, %s113
      %s128 = sphi 0, %s114
      %s132 = sphi 0, %s132
      %s134 = sphi 0, %s132
      %s135 = sphi 0, %s134
      %s149 = sphi 0, %s135
      %s153 = sphi 0, %s153
      %s155 = sphi 0, %s153
      %s156 = sphi 0, %s155
      %s170 = sphi 0, %s156
      %s174 = sphi 0, %s174
      %s176 = sphi 0, %s174
      %s177 = sphi 0, %s176
      %s191 = sphi 0, %s177
      %s199 = sphi 0, %s201
      %s202 = sphi 0, %s199
      %s203 = sphi 0, %s202
      %s219 = sphi 0, %s203
      %s227 = sphi 0, %s229
      %s230 = sphi 0, %s227
      %s231 = sphi 0, %s230
      %s247 = sphi 0, %s231
      %s255 = sphi 0, %s257
      %s258 = sphi 0, %s255
      %s259 = sphi 0, %s258
      %s275 = sphi 0, %s259
    $region4: #{tpu_custom_call.1} parent=1 // loop_header_branch
      %31 = sbr.rel (%p29) target = $region8
    $region5: #{tpu_custom_call.1} parent=1 // loop_body
      %s33 = ssub.s32 %s28, 1
      %s34 = ssub.s32 %s28, 2
      %s44 = sadd.s32 1, %s37
      %p45 = scmp.ge.s32.totalorder %s44, 2
      %s46 = scalar_select %p45, 0, %s44
      %s47 = sadd.s32 1, %s36
      %s48 = scalar_select %p45, %s47, %s36
      %p49 = scmp.ge.s32.totalorder %s48, 2
      %s50 = scalar_select %p49, 0, %s48
      %s51 = sadd.s32 1, %s35
      %s52 = scalar_select %p49, %s51, %s35
      %p53 = scmp.ge.s32.totalorder %s52, 2
      %s54 = scalar_select %p53, 0, %s52
      %s55 = ssub.s32 %s35, %s54
      %s56 = ssub.s32 %s36, %s50
      %s57 = sor.u32 %s55, %s56
      %p58 = scmp.eq.s32.totalorder %s57, 0
      %s60 = sadd.s32 %s59, 1
      %s61 = scalar_select %p58, %s59, %s60
      %p64 = pneg %p58
      %p65 = scmp.eq.s32.totalorder %s28, 7
      %p66 = por %p64, %p65
      %p67 = scmp.ne.s32.totalorder %s59, %s62
      %p68 = scmp.eq.s32.totalorder %s28, 0
      %p69 = por %p67, %p68
      %p70 = scmp.ne.s32.totalorder %s59, %s62
      %p71 = scmp.eq.s32.totalorder %s33, 7
      %p72 = por %p70, %p71
      %p73 = scmp.ne.s32.totalorder %s62, %s63
      %p74 = scmp.eq.s32.totalorder %s33, 0
      %p75 = por %p73, %p74
      %p76 = scmp.ne.s32.totalorder %s62, %s63
      %p77 = scmp.eq.s32.totalorder %s34, 7
      %p78 = por %p76, %p77
      %p80 = scmp.ne.s32.totalorder %s63, %s79
      %p81 = scmp.eq.s32.totalorder %s34, 0
      %p82 = por %p80, %p81
      %s83 = ssub.s32 %s35, %s54
      %s84 = ssub.s32 %s37, %s46
      %s85 = sor.u32 %s83, %s84
      %p86 = scmp.eq.s32.totalorder %s85, 0
      %s88 = sadd.s32 %s87, 1
      %s89 = scalar_select %p86, %s87, %s88
      %p92 = pneg %p86
      %p93 = scmp.eq.s32.totalorder %s28, 7
      %p94 = por %p92, %p93
      %p95 = scmp.ne.s32.totalorder %s87, %s90
      %p96 = scmp.eq.s32.totalorder %s28, 0
      %p97 = por %p95, %p96
      %p98 = scmp.ne.s32.totalorder %s87, %s90
      %p99 = scmp.eq.s32.totalorder %s33, 7
      %p100 = por %p98, %p99
      %p101 = scmp.ne.s32.totalorder %s90, %s91
      %p102 = scmp.eq.s32.totalorder %s33, 0
      %p103 = por %p101, %p102
      %p104 = scmp.ne.s32.totalorder %s90, %s91
      %p105 = scmp.eq.s32.totalorder %s34, 7
      %p106 = por %p104, %p105
      %p108 = scmp.ne.s32.totalorder %s91, %s107
      %p109 = scmp.eq.s32.totalorder %s34, 0
      %p110 = por %p108, %p109
      %s112 = sadd.s32 %s111, 1
      %p115 = scmp.eq.s32.totalorder %s28, 7
      %p116 = scmp.ne.s32.totalorder %s111, %s113
      %p117 = scmp.eq.s32.totalorder %s28, 0
      %p118 = por %p116, %p117
      %p119 = scmp.ne.s32.totalorder %s111, %s113
      %p120 = scmp.eq.s32.totalorder %s33, 7
      %p121 = por %p119, %p120
      %p122 = scmp.ne.s32.totalorder %s113, %s114
      %p123 = scmp.eq.s32.totalorder %s33, 0
      %p124 = por %p122, %p123
      %p125 = scmp.ne.s32.totalorder %s113, %s114
      %p126 = scmp.eq.s32.totalorder %s34, 7
      %p127 = por %p125, %p126
      %p129 = scmp.ne.s32.totalorder %s114, %s128
      %p130 = scmp.eq.s32.totalorder %s34, 0
      %p131 = por %p129, %p130
      %s133 = sadd.s32 %s132, 1
      %p136 = scmp.eq.s32.totalorder %s28, 7
      %p137 = scmp.ne.s32.totalorder %s132, %s134
      %p138 = scmp.eq.s32.totalorder %s28, 0
      %p139 = por %p137, %p138
      %p140 = scmp.ne.s32.totalorder %s132, %s134
      %p141 = scmp.eq.s32.totalorder %s33, 7
      %p142 = por %p140, %p141
      %p143 = scmp.ne.s32.totalorder %s134, %s135
      %p144 = scmp.eq.s32.totalorder %s33, 0
      %p145 = por %p143, %p144
      %p146 = scmp.ne.s32.totalorder %s134, %s135
      %p147 = scmp.eq.s32.totalorder %s34, 7
      %p148 = por %p146, %p147
      %p150 = scmp.ne.s32.totalorder %s135, %s149
      %p151 = scmp.eq.s32.totalorder %s34, 0
      %p152 = por %p150, %p151
      %s154 = sadd.s32 %s153, 1
      %p157 = scmp.eq.s32.totalorder %s28, 7
      %p158 = scmp.ne.s32.totalorder %s153, %s155
      %p159 = scmp.eq.s32.totalorder %s28, 0
      %p160 = por %p158, %p159
      %p161 = scmp.ne.s32.totalorder %s153, %s155
      %p162 = scmp.eq.s32.totalorder %s33, 7
      %p163 = por %p161, %p162
      %p164 = scmp.ne.s32.totalorder %s155, %s156
      %p165 = scmp.eq.s32.totalorder %s33, 0
      %p166 = por %p164, %p165
      %p167 = scmp.ne.s32.totalorder %s155, %s156
      %p168 = scmp.eq.s32.totalorder %s34, 7
      %p169 = por %p167, %p168
      %p171 = scmp.ne.s32.totalorder %s156, %s170
      %p172 = scmp.eq.s32.totalorder %s34, 0
      %p173 = por %p171, %p172
      %s175 = sadd.s32 %s174, 1
      %p178 = scmp.eq.s32.totalorder %s28, 7
      %p179 = scmp.ne.s32.totalorder %s174, %s176
      %p180 = scmp.eq.s32.totalorder %s28, 0
      %p181 = por %p179, %p180
      %p182 = scmp.ne.s32.totalorder %s174, %s176
      %p183 = scmp.eq.s32.totalorder %s33, 7
      %p184 = por %p182, %p183
      %p185 = scmp.ne.s32.totalorder %s176, %s177
      %p186 = scmp.eq.s32.totalorder %s33, 0
      %p187 = por %p185, %p186
      %p188 = scmp.ne.s32.totalorder %s176, %s177
      %p189 = scmp.eq.s32.totalorder %s34, 7
      %p190 = por %p188, %p189
      %p192 = scmp.ne.s32.totalorder %s177, %s191
      %p193 = scmp.eq.s32.totalorder %s34, 0
      %p194 = por %p192, %p193
      %s195 = ssub.s32 %s35, %s54
      %s196 = ssub.s32 %s36, %s50
      %s197 = sor.u32 %s195, %s196
      %p198 = scmp.eq.s32.totalorder %s197, 0
      %s200 = sadd.s32 %s199, 1
      %s201 = scalar_select %p198, %s199, %s200
      %p204 = pneg %p198
      %p205 = scmp.eq.s32.totalorder %s28, 7
      %p206 = por %p204, %p205
      %p207 = scmp.ne.s32.totalorder %s199, %s202
      %p208 = scmp.eq.s32.totalorder %s28, 0
      %p209 = por %p207, %p208
      %p210 = scmp.ne.s32.totalorder %s199, %s202
      %p211 = scmp.eq.s32.totalorder %s33, 7
      %p212 = por %p210, %p211
      %p213 = scmp.ne.s32.totalorder %s202, %s203
      %p214 = scmp.eq.s32.totalorder %s33, 0
      %p215 = por %p213, %p214
      %p216 = scmp.ne.s32.totalorder %s202, %s203
      %p217 = scmp.eq.s32.totalorder %s34, 7
      %p218 = por %p216, %p217
      %p220 = scmp.ne.s32.totalorder %s203, %s219
      %p221 = scmp.eq.s32.totalorder %s34, 0
      %p222 = por %p220, %p221
      %s223 = ssub.s32 %s35, %s54
      %s224 = ssub.s32 %s36, %s50
      %s225 = sor.u32 %s223, %s224
      %p226 = scmp.eq.s32.totalorder %s225, 0
      %s228 = sadd.s32 %s227, 1
      %s229 = scalar_select %p226, %s227, %s228
      %p232 = pneg %p226
      %p233 = scmp.eq.s32.totalorder %s28, 7
      %p234 = por %p232, %p233
      %p235 = scmp.ne.s32.totalorder %s227, %s230
      %p236 = scmp.eq.s32.totalorder %s28, 0
      %p237 = por %p235, %p236
      %p238 = scmp.ne.s32.totalorder %s227, %s230
      %p239 = scmp.eq.s32.totalorder %s33, 7
      %p240 = por %p238, %p239
      %p241 = scmp.ne.s32.totalorder %s230, %s231
      %p242 = scmp.eq.s32.totalorder %s33, 0
      %p243 = por %p241, %p242
      %p244 = scmp.ne.s32.totalorder %s230, %s231
      %p245 = scmp.eq.s32.totalorder %s34, 7
      %p246 = por %p244, %p245
      %p248 = scmp.ne.s32.totalorder %s231, %s247
      %p249 = scmp.eq.s32.totalorder %s34, 0
      %p250 = por %p248, %p249
      %s251 = ssub.s32 %s35, %s54
      %s252 = ssub.s32 %s36, %s50
      %s253 = sor.u32 %s251, %s252
      %p254 = scmp.eq.s32.totalorder %s253, 0
      %s256 = sadd.s32 %s255, 1
      %s257 = scalar_select %p254, %s255, %s256
      %p260 = pneg %p254
      %p261 = scmp.eq.s32.totalorder %s28, 7
      %p262 = por %p260, %p261
      %p263 = scmp.ne.s32.totalorder %s255, %s258
      %p264 = scmp.eq.s32.totalorder %s28, 0
      %p265 = por %p263, %p264
      %p266 = scmp.ne.s32.totalorder %s255, %s258
      %p267 = scmp.eq.s32.totalorder %s33, 7
      %p268 = por %p266, %p267
      %p269 = scmp.ne.s32.totalorder %s258, %s259
      %p270 = scmp.eq.s32.totalorder %s33, 0
      %p271 = por %p269, %p270
      %p272 = scmp.ne.s32.totalorder %s258, %s259
      %p273 = scmp.eq.s32.totalorder %s34, 7
      %p274 = por %p272, %p273
      %p276 = scmp.ne.s32.totalorder %s259, %s275
      %p277 = scmp.eq.s32.totalorder %s34, 0
      %p278 = por %p276, %p277
      %p279 = scmp.le.s32.totalorder 1, %s28
      %p280 = scmp.lt.s32.totalorder %s28, 9
      %p281 = pnand %p279, %p280
      %p282 = pneg %p281
      // Predicated region
      $region9: #{tpu_custom_call.1} parent=5 // pred_check
        _
      $region10: #{tpu_custom_call.1} parent=5 // pred_check_branch
        %284 = sbr.rel (%p281) target = $region12
      $region11: #{tpu_custom_call.1} parent=5 // pred_region
        %s285 = ssub.s32 %s28, 1
        // Predicated region
        $region13: #{tpu_custom_call.1} parent=11 // pred_check
          %p286 = pneg %p124
        $region14: #{tpu_custom_call.1} parent=11 // pred_check_branch
          %288 = sbr.rel (%p286) target = $region16
        $region15: #{tpu_custom_call.1} parent=11 // pred_region
          %s290 = ssub.s32 1024, 1024
          %291 = vsyncadd [#allocation9], %s290
          %s292 = sshll.u32 [#allocation10], 4
          %s293 = int_to_ptr.vmem [resolvable:$true] %s292
          %298 = dma.hbm_to_vmem [thread:$0]  %s2, 1024, %s293, [#allocation9], 64, 64, 4
        $region16: #{tpu_custom_call.1} parent=11 // pred_fallthru
          _
        // Predicated region
        $region17: #{tpu_custom_call.1} parent=11 // pred_check
          %p299 = pneg %p145
        $region18: #{tpu_custom_call.1} parent=11 // pred_check_branch
          %301 = sbr.rel (%p299) target = $region20
        $region19: #{tpu_custom_call.1} parent=11 // pred_region
          _
        $region20: #{tpu_custom_call.1} parent=11 // pred_fallthru
          _
        // Predicated region
        $region21: #{tpu_custom_call.1} parent=11 // pred_check
          %p302 = pneg %p166
        $region22: #{tpu_custom_call.1} parent=11 // pred_check_branch
          %304 = sbr.rel (%p302) target = $region24
        $region23: #{tpu_custom_call.1} parent=11 // pred_region
          %s306 = ssub.s32 2048, 2048
          %307 = vsyncadd [#allocation12], %s306
          %s308 = sshll.u32 [#allocation11], 4
          %s309 = int_to_ptr.vmem [resolvable:$true] %s308
          %314 = dma.hbm_to_vmem [thread:$0]  %s4, 2048, %s309, [#allocation12], 128, 128, 8
        $region24: #{tpu_custom_call.1} parent=11 // pred_fallthru
          _
        // Predicated region
        $region25: #{tpu_custom_call.1} parent=11 // pred_check
          %p315 = pneg %p187
        $region26: #{tpu_custom_call.1} parent=11 // pred_check_branch
          %317 = sbr.rel (%p315) target = $region28
        $region27: #{tpu_custom_call.1} parent=11 // pred_region
          _
        $region28: #{tpu_custom_call.1} parent=11 // pred_fallthru
          _
      $region12: #{tpu_custom_call.1} parent=5 // pred_fallthru
        _
      %p318 = scmp.lt.s32.totalorder %s28, 8
      // Predicated region
      $region29: #{tpu_custom_call.1} parent=5 // pred_check
        %p319 = pneg %p318
      $region30: #{tpu_custom_call.1} parent=5 // pred_check_branch
        %321 = sbr.rel (%p319) target = $region32
      $region31: #{tpu_custom_call.1} parent=5 // pred_region
        // Predicated region
        $region33: #{tpu_custom_call.1} parent=31 // pred_check
          %p322 = pneg %p69
        $region34: #{tpu_custom_call.1} parent=31 // pred_check_branch
          %324 = sbr.rel (%p322) target = $region36
        $region35: #{tpu_custom_call.1} parent=31 // pred_region
          %s325 = sand.u32 %s59, 1
          %s326 = scalar_lea.sflag [#allocation6], %s325
          %s327 = sand.u32 %s59, 1
          %s328 = smul.addr %s327, 32
          %s329 = scalar_lea.vmem [#allocation5], %s328
          %s330 = smul.u32 4, %s36
          %s332 = ssub.s32 512, 512
          %333 = vsyncadd %s326, %s332
          %s334 = smul.addr %s35, 8
          %s335 = sadd.s32 %s330, %s334
          %s336 = smul.addr %s335, 128
          %s337 = scalar_lea.hbm %s0, %s336
          %s338 = sshll.u32 %s329, 4
          %s339 = int_to_ptr.vmem [resolvable:$true] %s338
          %344 = dma.hbm_to_vmem [thread:$0]  %s337, 512, %s339, %s326, 128, 128, 8
        $region36: #{tpu_custom_call.1} parent=31 // pred_fallthru
          _
        // Predicated region
        $region37: #{tpu_custom_call.1} parent=31 // pred_check
          %p345 = pneg %p97
        $region38: #{tpu_custom_call.1} parent=31 // pred_check_branch
          %347 = sbr.rel (%p345) target = $region40
        $region39: #{tpu_custom_call.1} parent=31 // pred_region
          %s348 = sand.u32 %s28, 1
          %s349 = scalar_lea.sflag [#allocation9], %s348
          %s350 = sand.u32 %s87, 1
          %s351 = smul.addr %s350, 32
          %s352 = scalar_lea.vmem [#allocation8], %s351
          %s353 = smul.u32 4, %s37
          %s355 = ssub.s32 512, 512
          %356 = vsyncadd %s349, %s355
          %s357 = smul.addr %s35, 8
          %s358 = sadd.s32 %s353, %s357
          %s359 = smul.addr %s358, 128
          %s360 = scalar_lea.hbm %s1, %s359
          %s361 = sshll.u32 %s352, 4
          %s362 = int_to_ptr.vmem [resolvable:$true] %s361
          %367 = dma.hbm_to_vmem [thread:$0]  %s360, 512, %s362, %s349, 128, 128, 8
        $region40: #{tpu_custom_call.1} parent=31 // pred_fallthru
          _
      $region32: #{tpu_custom_call.1} parent=5 // pred_fallthru
        _
      %p368 = scmp.le.s32.totalorder 1, %s28
      %p369 = scmp.lt.s32.totalorder %s28, 9
      %p370 = pnand %p368, %p369
      %p371 = pneg %p370
      // Predicated region
      $region41: #{tpu_custom_call.1} parent=5 // pred_check
        _
      $region42: #{tpu_custom_call.1} parent=5 // pred_check_branch
        %373 = sbr.rel (%p370) target = $region44
      $region43: #{tpu_custom_call.1} parent=5 // pred_region
        %s374 = ssub.s32 %s28, 1
        %s375 = sand.u32 %s62, 1
        %s376 = scalar_lea.sflag [#allocation6], %s375
        %s377 = sand.u32 %s62, 1
        %s378 = smul.addr %s377, 32
        %s379 = scalar_lea.vmem [#allocation5], %s378
        // Predicated region
        $region45: #{tpu_custom_call.1} parent=43 // pred_check
          %p380 = pneg %p75
        $region46: #{tpu_custom_call.1} parent=43 // pred_check_branch
          %382 = sbr.rel (%p380) target = $region48
        $region47: #{tpu_custom_call.1} parent=43 // pred_region
          %383 = dma.done %s376, 512
        $region48: #{tpu_custom_call.1} parent=43 // pred_fallthru
          _
        %s384 = sand.u32 %s33, 1
        %s385 = scalar_lea.sflag [#allocation9], %s384
        %s386 = sand.u32 %s90, 1
        %s387 = smul.addr %s386, 32
        %s388 = scalar_lea.vmem [#allocation8], %s387
        // Predicated region
        $region49: #{tpu_custom_call.1} parent=43 // pred_check
          %p389 = pneg %p103
        $region50: #{tpu_custom_call.1} parent=43 // pred_check_branch
          %391 = sbr.rel (%p389) target = $region52
        $region51: #{tpu_custom_call.1} parent=43 // pred_region
          %392 = dma.done %s385, 512
        $region52: #{tpu_custom_call.1} parent=43 // pred_fallthru
          _
        // Predicated region
        $region53: #{tpu_custom_call.1} parent=43 // pred_check
          %p393 = pneg %p124
        $region54: #{tpu_custom_call.1} parent=43 // pred_check_branch
          %395 = sbr.rel (%p393) target = $region56
        $region55: #{tpu_custom_call.1} parent=43 // pred_region
          %396 = dma.done [#allocation9], 1024
        $region56: #{tpu_custom_call.1} parent=43 // pred_fallthru
          _
        // Predicated region
        $region57: #{tpu_custom_call.1} parent=43 // pred_check
          %p397 = pneg %p166
        $region58: #{tpu_custom_call.1} parent=43 // pred_check_branch
          %399 = sbr.rel (%p397) target = $region60
        $region59: #{tpu_custom_call.1} parent=43 // pred_region
          %400 = dma.done [#allocation12], 2048
        $region60: #{tpu_custom_call.1} parent=43 // pred_fallthru
          _
        %s401 = sand.u32 %s62, 1
        %s402 = scalar_lea.sflag [#allocation6], %s401
        %s403 = sand.u32 %s62, 1
        %s404 = smul.addr %s403, 32
        %s405 = scalar_lea.vmem [#allocation5], %s404
        %p406 = pneg %p75
        %p407 = pneg %p72
        %s408 = sand.u32 %s33, 1
        %s409 = scalar_lea.sflag [#allocation9], %s408
        %s410 = sand.u32 %s90, 1
        %s411 = smul.addr %s410, 32
        %s412 = scalar_lea.vmem [#allocation8], %s411
        %p413 = pneg %p103
        %p414 = pneg %p100
        %p415 = pneg %p124
        %p416 = pneg %p121
        %p417 = pneg %p145
        %p418 = pneg %p142
        %p419 = pneg %p166
        %p420 = pneg %p163
        %p421 = pneg %p187
        %p422 = pneg %p184
        %p423 = pneg %p215
        %p424 = pneg %p212
        %s425 = sand.u32 %s202, 1
        %s426 = scalar_lea.sflag [#allocation7], %s425
        %s427 = sand.u32 %s202, 1
        %s428 = smul.addr %s427, 32
        %s429 = scalar_lea.vmem [#allocation13], %s428
        %p430 = pneg %p243
        %p431 = pneg %p240
        %s432 = sand.u32 %s33, 1
        %s433 = scalar_lea.sflag [#allocation15], %s432
        %s434 = sand.u32 %s230, 1
        %s435 = smul.addr %s434, 32
        %s436 = scalar_lea.vmem [#allocation14], %s435
        %p437 = pneg %p271
        %p438 = pneg %p268
        %s439 = sand.u32 %s33, 1
        %s440 = scalar_lea.sflag [#allocation15], %s439
        %s441 = sand.u32 %s258, 1
        %s442 = smul.addr %s441, 2
        %s443 = scalar_lea.vmem [#allocation16], %s442
        %s444 = smul.u32 4, %s39
        %s445 = smul.u32 4, %s40
        %s446 = smul.u32 4, %s39
        %s447 = smul.u32 4, %s39
        %p449 = scmp.eq.s32.totalorder %s40, 0
        // Predicated region
        $region61: #{tpu_custom_call.1} parent=43 // pred_check
          %p450 = pneg %p449
        $region62: #{tpu_custom_call.1} parent=43 // pred_check_branch
          %452 = sbr.rel (%p450) target = $region64
        $region63: #{tpu_custom_call.1} parent=43 // pred_region
          %v453 = vld [vmem:[%s379] sm:$0xff]
          %v454 = vld [vmem:[%s379 + $0x8] sm:$0xff]
          %v455 = vld [vmem:[%s379 + $0x10] sm:$0xff]
          %v456 = vld [vmem:[%s379 + $0x18] sm:$0xff]
          %v457 = vmul.f32 %v453, %v453
          %v458 = vmul.f32 %v454, %v454
          %v459 = vmul.f32 %v455, %v455
          %v460 = vmul.f32 %v456, %v456
          %461 = vadd.xlane.f32.xlu0 %v457
          %v462 = vpop.xlane.xlu0 %461
          %463 = vadd.xlane.f32.xlu0 %v458
          %v464 = vpop.xlane.xlu0 %463
          %465 = vadd.xlane.f32.xlu0 %v459
          %v466 = vpop.xlane.xlu0 %465
          %467 = vadd.xlane.f32.xlu0 %v460
          %v468 = vpop.xlane.xlu0 %467
          %v469 = vmax.f32 %v462, 1e-24
          %v470 = vmax.f32 %v464, 1e-24
          %v471 = vmax.f32 %v466, 1e-24
          %v472 = vmax.f32 %v468, 1e-24
          %v473 = vrsqrt.pop %v469
          %v474 = vrsqrt.pop %v470
          %v475 = vrsqrt.pop %v471
          %v476 = vrsqrt.pop %v472
          %v477 = vmul.f32 %v453, %v473
          %v478 = vmul.f32 %v454, %v474
          %v479 = vmul.f32 %v455, %v475
          %v480 = vmul.f32 %v456, %v476
          %481 = vst [vmem:[#allocation3] sm:$0xff] %v477
          %482 = vst [vmem:[#allocation3 + $0x8] sm:$0xff] %v478
          %483 = vst [vmem:[#allocation3 + $0x10] sm:$0xff] %v479
          %484 = vst [vmem:[#allocation3 + $0x18] sm:$0xff] %v480
          %v485 = vpack.c.bf16 %v478, %v477
          %v486 = vpack.c.bf16 %v480, %v479
          %487 = vst [vmem:[#allocation4] sm:$0xff] %v485
          %488 = vst [vmem:[#allocation4 + $0x8] sm:$0xff] %v486
          %489 = vst [vmem:[#allocation2] sm:$0xff] 0.0
          %490 = vst [vmem:[#allocation2 + $0x8] sm:$0xff] 0.0
          %491 = vst [vmem:[#allocation2 + $0x10] sm:$0xff] 0.0
          %492 = vst [vmem:[#allocation2 + $0x18] sm:$0xff] 0.0
        $region64: #{tpu_custom_call.1} parent=43 // pred_fallthru
          _
        %v493 = vld [vmem:[%s388] sm:$0xff]
        %v494 = vld [vmem:[%s388 + $0x8] sm:$0xff]
        %v495 = vld [vmem:[%s388 + $0x10] sm:$0xff]
        %v496 = vld [vmem:[%s388 + $0x18] sm:$0xff]
        %v497 = vmul.f32 %v493, %v493
        %v498 = vmul.f32 %v494, %v494
        %v499 = vmul.f32 %v495, %v495
        %v500 = vmul.f32 %v496, %v496
        %501 = vadd.xlane.f32.xlu0 %v497
        %v502 = vpop.xlane.xlu0 %501
        %503 = vadd.xlane.f32.xlu0 %v498
        %v504 = vpop.xlane.xlu0 %503
        %505 = vadd.xlane.f32.xlu0 %v499
        %v506 = vpop.xlane.xlu0 %505
        %507 = vadd.xlane.f32.xlu0 %v500
        %v508 = vpop.xlane.xlu0 %507
        %v509 = vmax.f32 %v502, 1e-24
        %v510 = vmax.f32 %v504, 1e-24
        %v511 = vmax.f32 %v506, 1e-24
        %v512 = vmax.f32 %v508, 1e-24
        %v513 = vrsqrt.pop %v509
        %v514 = vrsqrt.pop %v510
        %v515 = vrsqrt.pop %v511
        %v516 = vrsqrt.pop %v512
        %v517 = vmul.f32 %v493, %v513
        %v518 = vmul.f32 %v494, %v514
        %v519 = vmul.f32 %v495, %v515
        %v520 = vmul.f32 %v496, %v516
        %v521 = vpack.c.bf16 %v518, %v517
        %v522 = vpack.c.bf16 %v520, %v519
        %v523 = vld [vmem:[#allocation4] sm:$0xff]
        %v524 = vld [vmem:[#allocation4 + $0x8] sm:$0xff]
        %525 = vmatprep.subr.bf16.mxu0 0
        %526 = vmatpush1.bf16.xpose.msra.mxu0 %v521
        %527 = vmatprep.subr.bf16.mxu0 0
        %528 = vmatpush1.bf16.xpose.msra.mxu0 %v522
        %529 = vmatprep.subr.bf16.mxu0 0
        %530 = vmatpush1.bf16.xpose.msra.mxu0 0
        %531 = vmatprep.subr.bf16.mxu0 0
        %532 = vmatpush1.bf16.xpose.msra.mxu0 0
        %533 = vmatprep.subr.bf16.mxu0 0
        %534 = vmatpush1.bf16.xpose.msra.mxu0 0
        %535 = vmatprep.subr.bf16.mxu0 0
        %536 = vmatpush1.bf16.xpose.msra.mxu0 0
        %537 = vmatprep.subr.bf16.mxu0 0
        %538 = vmatpush1.bf16.xpose.msra.mxu0 0
        %539 = vmatprep.subr.bf16.mxu0 0
        %540 = vmatpush1.bf16.xpose.msra.mxu0 0
        %541 = vmatprep.subr.bf16.mxu0 0
        %542 = vmatpush1.bf16.xpose.msra.mxu0 0
        %543 = vmatprep.subr.bf16.mxu0 0
        %544 = vmatpush1.bf16.xpose.msra.mxu0 0
        %545 = vmatprep.subr.bf16.mxu0 0
        %546 = vmatpush1.bf16.xpose.msra.mxu0 0
        %547 = vmatprep.subr.bf16.mxu0 0
        %548 = vmatpush1.bf16.xpose.msra.mxu0 0
        %549 = vmatprep.subr.bf16.mxu0 0
        %550 = vmatpush1.bf16.xpose.msra.mxu0 0
        %551 = vmatprep.subr.bf16.mxu0 0
        %552 = vmatpush1.bf16.xpose.msra.mxu0 0
        %553 = vmatprep.subr.bf16.mxu0 0
        %554 = vmatpush1.bf16.xpose.msra.mxu0 0
        %555 = vmatprep.subr.bf16.mxu0 0
        %556 = vmatpush1.bf16.xpose.msra.mxu0 0
        %557 = vmatprep.mubr.bf16.mxu0 0
        %558 = vmatmul.mubr.bf16.gmra.mrb[0].mxu0 %v523
        %v559 = vpop.f32.mrb[0].mxu0
        %v560 = vadd.f32 0.0, %v559
        %v561 = vpop.f32.mrb[0].mxu0
        %v562 = vpop.f32.mrb[0].mxu0
        %v563 = vadd.f32 0.0, %v562
        %v564 = vpop.f32.mrb[0].mxu0
        %565 = vmatprep.mubr.bf16.mxu0 0
        %566 = vmatmul.mubr.bf16.gmra.mrb[0].mxu0 %v524
        %v567 = vpop.f32.mrb[0].mxu0
        %v568 = vadd.f32 0.0, %v567
        %v569 = vpop.f32.mrb[0].mxu0
        %v570 = vpop.f32.mrb[0].mxu0
        %v571 = vadd.f32 0.0, %v570
        %v572 = vpop.f32.mrb[0].mxu0
        %573 = vdwg.mxu0
        %vm574 = vcmp.gt.f32.partialorder %v560, 0.5
        %vm575 = vcmp.gt.f32.partialorder %v563, 0.5
        %vm576 = vcmp.gt.f32.partialorder %v568, 0.5
        %vm577 = vcmp.gt.f32.partialorder %v571, 0.5
        %v578 = vsel %vm574, %v560, 0.0
        %v579 = vsel %vm575, %v563, 0.0
        %v580 = vsel %vm576, %v568, 0.0
        %v581 = vsel %vm577, %v571, 0.0
        %v582 = vld [vmem:[#allocation2] sm:$0xff]
        %v583 = vld [vmem:[#allocation2 + $0x8] sm:$0xff]
        %v584 = vld [vmem:[#allocation2 + $0x10] sm:$0xff]
        %v585 = vld [vmem:[#allocation2 + $0x18] sm:$0xff]
        %v586 = vpack.c.bf16 %v579, %v578
        %v587 = vpack.c.bf16 %v581, %v580
        %vm588 = vcmask 261120
        %v590 = vsel %vm588, %v586, 0
        %v593 = vsel %vm588, %v587, 0
        %595 = vmatprep.subr.bf16.mxu0 0
        %596 = vmatpush1.bf16.msra.mxu0 %v521
        %597 = vmatprep.subr.bf16.mxu0 0
        %598 = vmatpush1.bf16.msra.mxu0 %v522
        %599 = vmatprep.subr.bf16.mxu0 0
        %600 = vmatpush1.bf16.msra.mxu0 0
        %601 = vmatprep.subr.bf16.mxu0 0
        %602 = vmatpush1.bf16.msra.mxu0 0
        %603 = vmatprep.subr.bf16.mxu0 0
        %604 = vmatpush1.bf16.msra.mxu0 0
        %605 = vmatprep.subr.bf16.mxu0 0
        %606 = vmatpush1.bf16.msra.mxu0 0
        %607 = vmatprep.subr.bf16.mxu0 0
        %608 = vmatpush1.bf16.msra.mxu0 0
        %609 = vmatprep.subr.bf16.mxu0 0
        %610 = vmatpush1.bf16.msra.mxu0 0
        %611 = vmatprep.subr.bf16.mxu0 0
        %612 = vmatpush1.bf16.msra.mxu0 0
        %613 = vmatprep.subr.bf16.mxu0 0
        %614 = vmatpush1.bf16.msra.mxu0 0
        %615 = vmatprep.subr.bf16.mxu0 0
        %616 = vmatpush1.bf16.msra.mxu0 0
        %617 = vmatprep.subr.bf16.mxu0 0
        %618 = vmatpush1.bf16.msra.mxu0 0
        %619 = vmatprep.subr.bf16.mxu0 0
        %620 = vmatpush1.bf16.msra.mxu0 0
        %621 = vmatprep.subr.bf16.mxu0 0
        %622 = vmatpush1.bf16.msra.mxu0 0
        %623 = vmatprep.subr.bf16.mxu0 0
        %624 = vmatpush1.bf16.msra.mxu0 0
        %625 = vmatprep.subr.bf16.mxu0 0
        %626 = vmatpush1.bf16.msra.mxu0 0
        %627 = vmatprep.mubr.bf16.mxu0 0
        %628 = vmatmul.mubr.bf16.gmra.mrb[0].mxu0 %v590
        %v629 = vpop.f32.mrb[0].mxu0
        %v630 = vadd.f32 0.0, %v629
        %v631 = vpop.f32.mrb[0].mxu0
        %v632 = vpop.f32.mrb[0].mxu0
        %v633 = vadd.f32 0.0, %v632
        %v634 = vpop.f32.mrb[0].mxu0
        %635 = vmatprep.mubr.bf16.mxu0 0
        %636 = vmatmul.mubr.bf16.gmra.mrb[0].mxu0 %v593
        %v637 = vpop.f32.mrb[0].mxu0
        %v638 = vadd.f32 0.0, %v637
        %v639 = vpop.f32.mrb[0].mxu0
        %v640 = vpop.f32.mrb[0].mxu0
        %v641 = vadd.f32 0.0, %v640
        %v642 = vpop.f32.mrb[0].mxu0
        %643 = vdwg.mxu0
        %v644 = vadd.f32 %v582, %v630
        %v645 = vadd.f32 %v583, %v633
        %v646 = vadd.f32 %v584, %v638
        %v647 = vadd.f32 %v585, %v641
        %648 = vst [vmem:[#allocation2] sm:$0xff] %v644
        %649 = vst [vmem:[#allocation2 + $0x8] sm:$0xff] %v645
        %650 = vst [vmem:[#allocation2 + $0x10] sm:$0xff] %v646
        %651 = vst [vmem:[#allocation2 + $0x18] sm:$0xff] %v647
        %p652 = scmp.eq.s32.totalorder %s40, 1
        // Predicated region
        $region65: #{tpu_custom_call.1} parent=43 // pred_check
          %p653 = pneg %p652
        $region66: #{tpu_custom_call.1} parent=43 // pred_check_branch
          %655 = sbr.rel (%p653) target = $region68
        $region67: #{tpu_custom_call.1} parent=43 // pred_region
          %v656 = vld [vmem:[#allocation3] sm:$0xff]
          %v657 = vld [vmem:[#allocation3 + $0x8] sm:$0xff]
          %v658 = vld [vmem:[#allocation3 + $0x10] sm:$0xff]
          %v659 = vld [vmem:[#allocation3 + $0x18] sm:$0xff]
          %v660 = vld [vmem:[#allocation2] sm:$0xff]
          %v661 = vld [vmem:[#allocation2 + $0x8] sm:$0xff]
          %v662 = vld [vmem:[#allocation2 + $0x10] sm:$0xff]
          %v663 = vld [vmem:[#allocation2 + $0x18] sm:$0xff]
          %v664 = vpack.c.bf16 %v661, %v660
          %v665 = vpack.c.bf16 %v663, %v662
          %v666 = vld [vmem:[#allocation10] sm:$0xf]
          %v667 = vld [vmem:[#allocation10 + $0x4] sm:$0xf]
          %v668 = vld [vmem:[#allocation10 + $0x8] sm:$0xf]
          %v669 = vld [vmem:[#allocation10 + $0xc] sm:$0xf]
          %v670 = vld [vmem:[#allocation10 + $0x10] sm:$0xf]
          %v671 = vld [vmem:[#allocation10 + $0x14] sm:$0xf]
          %v672 = vld [vmem:[#allocation10 + $0x18] sm:$0xf]
          %v673 = vld [vmem:[#allocation10 + $0x1c] sm:$0xf]
          %v674 = vld [vmem:[#allocation10 + $0x20] sm:$0xf]
          %v675 = vld [vmem:[#allocation10 + $0x24] sm:$0xf]
          %v676 = vld [vmem:[#allocation10 + $0x28] sm:$0xf]
          %v677 = vld [vmem:[#allocation10 + $0x2c] sm:$0xf]
          %v678 = vld [vmem:[#allocation10 + $0x30] sm:$0xf]
          %v679 = vld [vmem:[#allocation10 + $0x34] sm:$0xf]
          %v680 = vld [vmem:[#allocation10 + $0x38] sm:$0xf]
          %v681 = vld [vmem:[#allocation10 + $0x3c] sm:$0xf]
          %v682 = vld [vmem:[%s3] sm:$0x1]
          %v684 = vlaneseq
          %v685 = vshrl.u32 %v684, 7
          %v686 = vsub.s32 0, %v685
          %v687 = vrot.slane %v682, %v686
          %v705 = vunpack.c.l.b16 %v666
          %v706 = vunpack.c.l.b16 %v667
          %v707 = vunpack.c.l.b16 %v668
          %v708 = vunpack.c.l.b16 %v669
          %v709 = vunpack.c.l.b16 %v670
          %v710 = vunpack.c.l.b16 %v671
          %v711 = vunpack.c.l.b16 %v672
          %v712 = vunpack.c.l.b16 %v673
          %v713 = vunpack.c.l.b16 %v674
          %v714 = vunpack.c.l.b16 %v675
          %v715 = vunpack.c.l.b16 %v676
          %v716 = vunpack.c.l.b16 %v677
          %v717 = vunpack.c.l.b16 %v678
          %v718 = vunpack.c.l.b16 %v679
          %v719 = vunpack.c.l.b16 %v680
          %v720 = vunpack.c.l.b16 %v681
          %v721 = vpack.c.b16 %v706, %v705
          %v722 = vpack.c.b16 %v708, %v707
          %v723 = vpack.c.b16 %v710, %v709
          %v724 = vpack.c.b16 %v712, %v711
          %v725 = vpack.c.b16 %v714, %v713
          %v726 = vpack.c.b16 %v716, %v715
          %v727 = vpack.c.b16 %v718, %v717
          %v728 = vpack.c.b16 %v720, %v719
          %737 = vmatprep.subr.bf16.mxu0 0
          %738 = vmatpush1.bf16.msra.mxu0 %v721
          %739 = vmatprep.subr.bf16.mxu0 0
          %740 = vmatpush1.bf16.msra.mxu0 %v722
          %741 = vmatprep.subr.bf16.mxu0 0
          %742 = vmatpush1.bf16.msra.mxu0 %v723
          %743 = vmatprep.subr.bf16.mxu0 0
          %744 = vmatpush1.bf16.msra.mxu0 %v724
          %745 = vmatprep.subr.bf16.mxu0 0
          %746 = vmatpush1.bf16.msra.mxu0 %v725
          %747 = vmatprep.subr.bf16.mxu0 0
          %748 = vmatpush1.bf16.msra.mxu0 %v726
          %749 = vmatprep.subr.bf16.mxu0 0
          %750 = vmatpush1.bf16.msra.mxu0 %v727
          %751 = vmatprep.subr.bf16.mxu0 0
          %752 = vmatpush1.bf16.msra.mxu0 %v728
          %753 = vmatprep.subr.bf16.mxu0 0
          %754 = vmatpush1.bf16.msra.mxu0 0
          %755 = vmatprep.subr.bf16.mxu0 0
          %756 = vmatpush1.bf16.msra.mxu0 0
          %757 = vmatprep.subr.bf16.mxu0 0
          %758 = vmatpush1.bf16.msra.mxu0 0
          %759 = vmatprep.subr.bf16.mxu0 0
          %760 = vmatpush1.bf16.msra.mxu0 0
          %761 = vmatprep.subr.bf16.mxu0 0
          %762 = vmatpush1.bf16.msra.mxu0 0
          %763 = vmatprep.subr.bf16.mxu0 0
          %764 = vmatpush1.bf16.msra.mxu0 0
          %765 = vmatprep.subr.bf16.mxu0 0
          %766 = vmatpush1.bf16.msra.mxu0 0
          %767 = vmatprep.subr.bf16.mxu0 0
          %768 = vmatpush1.bf16.msra.mxu0 0
          %769 = vmatprep.mubr.bf16.mxu0 0
          %770 = vmatmul.mubr.bf16.gmra.mrb[0].mxu0 %v664
          %v771 = vpop.f32.mrb[0].mxu0
          %v772 = vadd.f32 %v687, %v771
          %v773 = vpop.f32.mrb[0].mxu0
          %v774 = vpop.f32.mrb[0].mxu0
          %v775 = vadd.f32 %v687, %v774
          %v776 = vpop.f32.mrb[0].mxu0
          %777 = vmatprep.mubr.bf16.mxu0 0
          %778 = vmatmul.mubr.bf16.gmra.mrb[0].mxu0 %v665
          %v779 = vpop.f32.mrb[0].mxu0
          %v780 = vadd.f32 %v687, %v779
          %v781 = vpop.f32.mrb[0].mxu0
          %v782 = vpop.f32.mrb[0].mxu0
          %v783 = vadd.f32 %v687, %v782
          %v784 = vpop.f32.mrb[0].mxu0
          %785 = vdwg.mxu0
          %v786 = vld [vmem:[#allocation4] sm:$0xff]
          %v787 = vld [vmem:[#allocation4 + $0x8] sm:$0xff]
          %v788 = vld [vmem:[#allocation11] sm:$0xff]
          %v789 = vld [vmem:[#allocation11 + $0x8] sm:$0xff]
          %v790 = vld [vmem:[#allocation11 + $0x10] sm:$0xff]
          %v791 = vld [vmem:[#allocation11 + $0x18] sm:$0xff]
          %v792 = vld [vmem:[#allocation11 + $0x20] sm:$0xff]
          %v793 = vld [vmem:[#allocation11 + $0x28] sm:$0xff]
          %v794 = vld [vmem:[#allocation11 + $0x30] sm:$0xff]
          %v795 = vld [vmem:[#allocation11 + $0x38] sm:$0xff]
          %v796 = vld [vmem:[#allocation11 + $0x40] sm:$0xff]
          %v797 = vld [vmem:[#allocation11 + $0x48] sm:$0xff]
          %v798 = vld [vmem:[#allocation11 + $0x50] sm:$0xff]
          %v799 = vld [vmem:[#allocation11 + $0x58] sm:$0xff]
          %v800 = vld [vmem:[#allocation11 + $0x60] sm:$0xff]
          %v801 = vld [vmem:[#allocation11 + $0x68] sm:$0xff]
          %v802 = vld [vmem:[#allocation11 + $0x70] sm:$0xff]
          %v803 = vld [vmem:[#allocation11 + $0x78] sm:$0xff]
          %v804 = vld [vmem:[%s5] sm:$0x3]
          %v806 = vlaneseq
          %v807 = vshrl.u32 %v806, 7
          %v808 = vsub.s32 0, %v807
          %v809 = vrot.slane %v804, %v808
          %v810 = vlaneseq
          %v811 = vshrl.u32 %v810, 7
          %v812 = vsub.s32 1, %v811
          %v813 = vrot.slane %v804, %v812
          %v832 = vunpack.c.l.b16 %v788
          %v833 = vunpack.c.h.b16 %v788
          %v834 = vunpack.c.l.b16 %v789
          %v835 = vunpack.c.h.b16 %v789
          %v836 = vunpack.c.l.b16 %v790
          %v837 = vunpack.c.h.b16 %v790
          %v838 = vunpack.c.l.b16 %v791
          %v839 = vunpack.c.h.b16 %v791
          %v840 = vunpack.c.l.b16 %v792
          %v841 = vunpack.c.h.b16 %v792
          %v842 = vunpack.c.l.b16 %v793
          %v843 = vunpack.c.h.b16 %v793
          %v844 = vunpack.c.l.b16 %v794
          %v845 = vunpack.c.h.b16 %v794
          %v846 = vunpack.c.l.b16 %v795
          %v847 = vunpack.c.h.b16 %v795
          %v848 = vunpack.c.l.b16 %v796
          %v849 = vunpack.c.h.b16 %v796
          %v850 = vunpack.c.l.b16 %v797
          %v851 = vunpack.c.h.b16 %v797
          %v852 = vunpack.c.l.b16 %v798
          %v853 = vunpack.c.h.b16 %v798
          %v854 = vunpack.c.l.b16 %v799
          %v855 = vunpack.c.h.b16 %v799
          %v856 = vunpack.c.l.b16 %v800
          %v857 = vunpack.c.h.b16 %v800
          %v858 = vunpack.c.l.b16 %v801
          %v859 = vunpack.c.h.b16 %v801
          %v860 = vunpack.c.l.b16 %v802
          %v861 = vunpack.c.h.b16 %v802
          %v862 = vunpack.c.l.b16 %v803
          %v863 = vunpack.c.h.b16 %v803
          %v864 = vpack.c.b16 %v834, %v832
          %v865 = vpack.c.b16 %v835, %v833
          %v866 = vpack.c.b16 %v838, %v836
          %v867 = vpack.c.b16 %v839, %v837
          %v868 = vpack.c.b16 %v842, %v840
          %v869 = vpack.c.b16 %v843, %v841
          %v870 = vpack.c.b16 %v846, %v844
          %v871 = vpack.c.b16 %v847, %v845
          %v872 = vpack.c.b16 %v850, %v848
          %v873 = vpack.c.b16 %v851, %v849
          %v874 = vpack.c.b16 %v854, %v852
          %v875 = vpack.c.b16 %v855, %v853
          %v876 = vpack.c.b16 %v858, %v856
          %v877 = vpack.c.b16 %v859, %v857
          %v878 = vpack.c.b16 %v862, %v860
          %v879 = vpack.c.b16 %v863, %v861
          %896 = vmatprep.subr.bf16.mxu0 %v865
          %897 = vmatpush1.bf16.msra.mxu0 %v864
          %898 = vmatprep.subr.bf16.mxu0 %v867
          %899 = vmatpush1.bf16.msra.mxu0 %v866
          %900 = vmatprep.subr.bf16.mxu0 %v869
          %901 = vmatpush1.bf16.msra.mxu0 %v868
          %902 = vmatprep.subr.bf16.mxu0 %v871
          %903 = vmatpush1.bf16.msra.mxu0 %v870
          %904 = vmatprep.subr.bf16.mxu0 %v873
          %905 = vmatpush1.bf16.msra.mxu0 %v872
          %906 = vmatprep.subr.bf16.mxu0 %v875
          %907 = vmatpush1.bf16.msra.mxu0 %v874
          %908 = vmatprep.subr.bf16.mxu0 %v877
          %909 = vmatpush1.bf16.msra.mxu0 %v876
          %910 = vmatprep.subr.bf16.mxu0 %v879
          %911 = vmatpush1.bf16.msra.mxu0 %v878
          %912 = vmatprep.subr.bf16.mxu0 0
          %913 = vmatpush1.bf16.msra.mxu0 0
          %914 = vmatprep.subr.bf16.mxu0 0
          %915 = vmatpush1.bf16.msra.mxu0 0
          %916 = vmatprep.subr.bf16.mxu0 0
          %917 = vmatpush1.bf16.msra.mxu0 0
          %918 = vmatprep.subr.bf16.mxu0 0
          %919 = vmatpush1.bf16.msra.mxu0 0
          %920 = vmatprep.subr.bf16.mxu0 0
          %921 = vmatpush1.bf16.msra.mxu0 0
          %922 = vmatprep.subr.bf16.mxu0 0
          %923 = vmatpush1.bf16.msra.mxu0 0
          %924 = vmatprep.subr.bf16.mxu0 0
          %925 = vmatpush1.bf16.msra.mxu0 0
          %926 = vmatprep.subr.bf16.mxu0 0
          %927 = vmatpush1.bf16.msra.mxu0 0
          %928 = vmatprep.mubr.bf16.mxu0 0
          %929 = vmatmul.mubr.bf16.gmra.mrb[0].mxu0 %v786
          %v930 = vpop.f32.mrb[0].mxu0
          %v931 = vadd.f32 %v809, %v930
          %v932 = vpop.f32.mrb[0].mxu0
          %v933 = vadd.f32 %v813, %v932
          %v934 = vpop.f32.mrb[0].mxu0
          %v935 = vadd.f32 %v809, %v934
          %v936 = vpop.f32.mrb[0].mxu0
          %v937 = vadd.f32 %v813, %v936
          %938 = vmatprep.mubr.bf16.mxu0 0
          %939 = vmatmul.mubr.bf16.gmra.mrb[0].mxu0 %v787
          %v940 = vpop.f32.mrb[0].mxu0
          %v941 = vadd.f32 %v809, %v940
          %v942 = vpop.f32.mrb[0].mxu0
          %v943 = vadd.f32 %v813, %v942
          %v944 = vpop.f32.mrb[0].mxu0
          %v945 = vadd.f32 %v809, %v944
          %v946 = vpop.f32.mrb[0].mxu0
          %v947 = vadd.f32 %v813, %v946
          %948 = vdwg.mxu0
          %v949 = vxor.u32 %v931, 2147483648
          %v950 = vxor.u32 %v935, 2147483648
          %v951 = vxor.u32 %v941, 2147483648
          %v952 = vxor.u32 %v945, 2147483648
          %v953 = vmul.f32 %v949, 1.442695
          %v954 = vpow.pop %v953
          %v955 = vmul.f32 %v950, 1.442695
          %v956 = vpow.pop %v955
          %v957 = vmul.f32 %v951, 1.442695
          %v958 = vpow.pop %v957
          %v959 = vmul.f32 %v952, 1.442695
          %v960 = vpow.pop %v959
          %v961 = vadd.f32 %v954, 1.0
          %v962 = vadd.f32 %v956, 1.0
          %v963 = vadd.f32 %v958, 1.0
          %v964 = vadd.f32 %v960, 1.0
          %v965 = vrcp.pop %v961
          %v966 = vmul.f32 1.0, %v965
          %v967 = vrcp.pop %v962
          %v968 = vmul.f32 1.0, %v967
          %v969 = vrcp.pop %v963
          %v970 = vmul.f32 1.0, %v969
          %v971 = vrcp.pop %v964
          %v972 = vmul.f32 1.0, %v971
          %v973 = vmul.f32 %v966, %v772
          %v974 = vmul.f32 %v968, %v775
          %v975 = vmul.f32 %v970, %v780
          %v976 = vmul.f32 %v972, %v783
          %v977 = vadd.f32 %v973, %v933
          %v978 = vadd.f32 %v974, %v937
          %v979 = vadd.f32 %v975, %v943
          %v980 = vadd.f32 %v976, %v947
          %981 = vst [vmem:[%s429] sm:$0xff] %v977
          %982 = vst [vmem:[%s429 + $0x8] sm:$0xff] %v978
          %983 = vst [vmem:[%s429 + $0x10] sm:$0xff] %v979
          %984 = vst [vmem:[%s429 + $0x18] sm:$0xff] %v980
          %985 = vst [vmem:[%s436] sm:$0xff] %v656
          %986 = vst [vmem:[%s436 + $0x8] sm:$0xff] %v657
          %987 = vst [vmem:[%s436 + $0x10] sm:$0xff] %v658
          %988 = vst [vmem:[%s436 + $0x18] sm:$0xff] %v659
          %v989 = vadd.f32 %v977, %v978
          %v990 = vadd.f32 %v989, %v979
          %v991 = vadd.f32 %v990, %v980
          %v992 = vrot.slane %v991, 4
          %v993 = vadd.f32 %v991, %v992
          %v994 = vrot.slane %v993, 2
          %v995 = vadd.f32 %v993, %v994
          %v996 = vrot.slane %v995, 1
          %v997 = vadd.f32 %v995, %v996
          %v998 = vmul.f32 %v977, %v977
          %v999 = vmul.f32 %v978, %v978
          %v1000 = vmul.f32 %v979, %v979
          %v1001 = vmul.f32 %v980, %v980
          %v1002 = vadd.f32 %v998, %v999
          %v1003 = vadd.f32 %v1002, %v1000
          %v1004 = vadd.f32 %v1003, %v1001
          %v1005 = vrot.slane %v1004, 4
          %v1006 = vadd.f32 %v1004, %v1005
          %v1007 = vrot.slane %v1006, 2
          %v1008 = vadd.f32 %v1006, %v1007
          %v1009 = vrot.slane %v1008, 1
          %v1010 = vadd.f32 %v1008, %v1009
          %vm1011 = vcmask 1040384
          %v1012 = vsel %vm1011, %v997, %v1010
          %1013 = vst [vmem:[%s443] sm:$0x3] %v1012
        $region68: #{tpu_custom_call.1} parent=43 // pred_fallthru
          _
        %s1014 = sand.u32 %s202, 1
        %s1015 = scalar_lea.sflag [#allocation7], %s1014
        %s1016 = sand.u32 %s202, 1
        %s1017 = smul.addr %s1016, 32
        %s1018 = scalar_lea.vmem [#allocation13], %s1017
        %s1019 = sand.u32 %s33, 1
        %s1020 = scalar_lea.sflag [#allocation15], %s1019
        %s1021 = sand.u32 %s230, 1
        %s1022 = smul.addr %s1021, 32
        %s1023 = scalar_lea.vmem [#allocation14], %s1022
        %s1024 = sand.u32 %s33, 1
        %s1025 = scalar_lea.sflag [#allocation15], %s1024
        %s1026 = sand.u32 %s258, 1
        %s1027 = smul.addr %s1026, 2
        %s1028 = scalar_lea.vmem [#allocation16], %s1027
        // Predicated region
        $region69: #{tpu_custom_call.1} parent=43 // pred_check
          %p1029 = pneg %p212
        $region70: #{tpu_custom_call.1} parent=43 // pred_check_branch
          %1031 = sbr.rel (%p1029) target = $region72
        $region71: #{tpu_custom_call.1} parent=43 // pred_region
          %s1032 = smul.u32 4, %s39
          %s1034 = ssub.s32 512, 512
          %1035 = vsyncadd %s1015, %s1034
          %s1036 = smul.addr %s38, 8
          %s1037 = sadd.s32 %s1032, %s1036
          %s1038 = smul.addr %s1037, 128
          %s1039 = scalar_lea.hbm %s6, %s1038
          %s1040 = sshll.u32 %s1018, 4
          %s1041 = int_to_ptr.vmem [resolvable:$true] %s1040
          %1046 = dma.vmem_to_hbm [thread:$0]  %s1041, 512, %s1039, %s1015, 128, 128, 8
        $region72: #{tpu_custom_call.1} parent=43 // pred_fallthru
          _
        // Predicated region
        $region73: #{tpu_custom_call.1} parent=43 // pred_check
          %p1047 = pneg %p240
        $region74: #{tpu_custom_call.1} parent=43 // pred_check_branch
          %1049 = sbr.rel (%p1047) target = $region76
        $region75: #{tpu_custom_call.1} parent=43 // pred_region
          %s1050 = smul.u32 4, %s39
          %s1052 = ssub.s32 512, 512
          %1053 = vsyncadd %s1020, %s1052
          %s1054 = smul.addr %s38, 8
          %s1055 = sadd.s32 %s1050, %s1054
          %s1056 = smul.addr %s1055, 128
          %s1057 = scalar_lea.hbm %s7, %s1056
          %s1058 = sshll.u32 %s1023, 4
          %s1059 = int_to_ptr.vmem [resolvable:$true] %s1058
          %1064 = dma.vmem_to_hbm [thread:$0]  %s1059, 512, %s1057, %s1020, 128, 128, 8
        $region76: #{tpu_custom_call.1} parent=43 // pred_fallthru
          _
        // Predicated region
        $region77: #{tpu_custom_call.1} parent=43 // pred_check
          %p1065 = pneg %p268
        $region78: #{tpu_custom_call.1} parent=43 // pred_check_branch
          %1067 = sbr.rel (%p1065) target = $region80
        $region79: #{tpu_custom_call.1} parent=43 // pred_region
          %s1069 = ssub.s32 32, 32
          %1070 = vsyncadd %s1025, %s1069
          %s1071 = smul.addr %s38, 2
          %s1072 = sadd.s32 %s39, %s1071
          %s1073 = smul.addr %s1072, 32
          %s1074 = scalar_lea.hbm %s8, %s1073
          %s1076 = sshll.u32 %s1028, 4
          %s1077 = int_to_ptr.vmem [resolvable:$true] %s1076
          %1079 = dma.vmem_to_hbm [thread:$0]  %s1077, 32, %s1074, %s1025
        $region80: #{tpu_custom_call.1} parent=43 // pred_fallthru
          _
      $region44: #{tpu_custom_call.1} parent=5 // pred_fallthru
        _
      %p1080 = scmp.le.s32.totalorder 2, %s28
      // Predicated region
      $region81: #{tpu_custom_call.1} parent=5 // pred_check
        %p1081 = pneg %p1080
      $region82: #{tpu_custom_call.1} parent=5 // pred_check_branch
        %1083 = sbr.rel (%p1081) target = $region84
      $region83: #{tpu_custom_call.1} parent=5 // pred_region
        %s1084 = ssub.s32 %s28, 2
        // Predicated region
        $region85: #{tpu_custom_call.1} parent=83 // pred_check
          %p1085 = pneg %p218
        $region86: #{tpu_custom_call.1} parent=83 // pred_check_branch
          %1087 = sbr.rel (%p1085) target = $region88
        $region87: #{tpu_custom_call.1} parent=83 // pred_region
          %s1088 = sand.u32 %s203, 1
          %s1089 = scalar_lea.sflag [#allocation7], %s1088
          %s1090 = sand.u32 %s203, 1
          %s1091 = smul.addr %s1090, 32
          %s1092 = scalar_lea.vmem [#allocation13], %s1091
          %1093 = dma.done %s1089, 512
        $region88: #{tpu_custom_call.1} parent=83 // pred_fallthru
          _
        // Predicated region
        $region89: #{tpu_custom_call.1} parent=83 // pred_check
          %p1094 = pneg %p246
        $region90: #{tpu_custom_call.1} parent=83 // pred_check_branch
          %1096 = sbr.rel (%p1094) target = $region92
        $region91: #{tpu_custom_call.1} parent=83 // pred_region
          %s1097 = sand.u32 %s34, 1
          %s1098 = scalar_lea.sflag [#allocation15], %s1097
          %s1099 = sand.u32 %s231, 1
          %s1100 = smul.addr %s1099, 32
          %s1101 = scalar_lea.vmem [#allocation14], %s1100
          %1102 = dma.done %s1098, 512
        $region92: #{tpu_custom_call.1} parent=83 // pred_fallthru
          _
        // Predicated region
        $region93: #{tpu_custom_call.1} parent=83 // pred_check
          %p1103 = pneg %p274
        $region94: #{tpu_custom_call.1} parent=83 // pred_check_branch
          %1105 = sbr.rel (%p1103) target = $region96
        $region95: #{tpu_custom_call.1} parent=83 // pred_region
          %s1106 = sand.u32 %s34, 1
          %s1107 = scalar_lea.sflag [#allocation15], %s1106
          %s1108 = sand.u32 %s259, 1
          %s1109 = smul.addr %s1108, 2
          %s1110 = scalar_lea.vmem [#allocation16], %s1109
          %1111 = dma.done %s1107, 32
        $region96: #{tpu_custom_call.1} parent=83 // pred_fallthru
          _
      $region84: #{tpu_custom_call.1} parent=5 // pred_fallthru
        _
    $region6: #{tpu_custom_call.1} parent=1 // loop_footer
      %s32 = sadd.s32 1, %s28
    $region7: #{tpu_custom_call.1} parent=1 // loop_footer_branch
      %27 = sbr.rel target = $region3
    $region8: #{tpu_custom_call.1} parent=1 // loop_exit
      _
    %1112 = vsyncpa [#allocation6], 1
    %s1113 = scalar_lea.sflag [#allocation6], 1
    %1114 = vsyncpa %s1113, 1
    %1115 = vsyncpa [#allocation9], 1
    %s1116 = scalar_lea.sflag [#allocation9], 1
    %1117 = vsyncpa %s1116, 1
    %1118 = vsyncpa [#allocation12], 1
    %1119 = vsyncpa [#allocation7], 1
    %s1120 = scalar_lea.sflag [#allocation7], 1
    %1121 = vsyncpa %s1120, 1
    %1122 = vsyncpa [#allocation15], 1
    %s1123 = scalar_lea.sflag [#allocation15], 1
    %1124 = vsyncpa %s1123, 1

</llo_original>
